<compile_context>
chip_gen: v5e
topology: v5e:2x2
jax: 0.10.0
libtpu: 0.0.40
codegen_flags: <defaults>
</compile_context>

<pallas_src>
import functools

import jax
import jax.numpy as jnp
from jax.experimental import pallas as pl
from jax.experimental.pallas import tpu as pltpu


def _round_up(x, m):
    return ((x + m - 1) // m) * m


def _lse_rows(zt, zts):
    """Row logsumexp over the reference's 4B-1 non-diagonal columns.

    zt, zts: (TB, 2B, D) f32 with zts = zt / temp.  Returns (TB, 2B).
    """
    sim = jnp.einsum('tid,tjd->tij', zts, zt,
                     preferred_element_type=jnp.float32)        # (TB, 2B, 2B)
    m = jnp.max(sim, axis=-1)                                   # (TB, 2B)
    s = jnp.sum(jnp.exp(sim - m[..., None]), axis=-1)           # (TB, 2B)
    diag = jnp.sum(zts * zt, axis=-1)                           # sim[i,i] directly
    # sum_{j != i} exp(sim[i,j]) over the reference's 4B-1 columns
    #   == 2 * S_i - exp(sim[i,i]).
    return m + jnp.log(2.0 * s - jnp.exp(diag - m))


def _time_mask(nll_rows_tb, T, TB, rows):
    """Zero out columns belonging to out-of-range (ragged) timesteps."""
    t0 = pl.program_id(0) * TB
    t_idx = t0 + jax.lax.broadcasted_iota(jnp.int32, (rows, TB), 1)
    return jnp.where(t_idx < T, nll_rows_tb, 0.0)


def _closs_kernel_direct(z1_ref, z2_ref, out_ref, *, B, T, TB, temp):
    """Zero-copy path.  z1_ref/z2_ref: (B, TB, D) blocks; out_ref: (2B, TB)."""
    rows = 2 * B
    inv_temp = jnp.float32(1.0 / temp)
    z1b = z1_ref[...].astype(jnp.float32)                       # (B, TB, D)
    z2b = z2_ref[...].astype(jnp.float32)
    zq = jnp.concatenate([z1b, z2b], axis=0)                    # (2B, TB, D)
    zt = pltpu.einshape('btd->tbd', zq)                         # (TB, 2B, D) in VMEM
    lse = _lse_rows(zt, zt * inv_temp)                          # (TB, 2B)
    # Positive-pair logit straight from the two blocks (rows i and B+i pair up).
    pos_half = jnp.sum(z1b * z2b, axis=-1) * inv_temp           # (B, TB)
    pos = jnp.concatenate([pos_half, pos_half], axis=0)         # (2B, TB)
    nll = jnp.transpose(lse) - pos                              # (2B, TB)
    out_ref[...] = _time_mask(nll, T, TB, rows)


def _closs_kernel_slab(zt_ref, out_ref, *, B, T, TB, temp):
    """Fallback path.  zt_ref: (TB, 2B, D) block of the time-major slab."""
    rows = 2 * B
    inv_temp = jnp.float32(1.0 / temp)
    zt = zt_ref[...].astype(jnp.float32)
    zts = zt * inv_temp
    lse = _lse_rows(zt, zts)                                    # (TB, 2B)
    pos_half = jnp.sum(zts[:, :B, :] * zt[:, B:, :], axis=-1)   # (TB, B)
    pos_half = jnp.transpose(pos_half)                          # (B, TB)
    pos = jnp.concatenate([pos_half, pos_half], axis=0)         # (2B, TB)
    nll = jnp.transpose(lse) - pos
    out_ref[...] = _time_mask(nll, T, TB, rows)


def _choose_time_block(B, T, D):
    """Pick TB (multiple of 128, or == T) from an (8,128)-padding-aware VMEM
    estimate, capped so the "parallel" grid keeps >= ~4 steps."""
    rows = 2 * B
    rows8 = _round_up(rows, 8)
    rows_l = _round_up(rows, 128)
    d_l = _round_up(D, 128)
    # f32 VMEM bytes per timestep: double-buffered inputs, concat + time-major
    # copies, ~3 sim-sized temporaries, small per-row vectors, output block.
    per_t = 4 * (2 * 2 * B * d_l + 2 * rows8 * d_l
                 + 3 * rows8 * rows_l + 10 * rows_l + 2 * rows8)
    try:
        phys = pltpu.get_tpu_info().vmem_capacity_bytes
    except Exception:
        phys = 64 * 1024 * 1024                     # assume v7x-sized VMEM
    # ~40 MiB of live blocks on 128 MiB parts (v5e/v6e), ~20 MiB on v7x.
    budget = (40 if phys >= 128 * 1024 * 1024 else 20) * 1024 * 1024
    tb = budget // per_t
    tb = min(tb, max(128, _round_up(-(-T // 4), 128)))   # keep >= ~4 grid steps
    tb = max(128, (tb // 128) * 128)                     # lane-dense output blocks
    if tb >= T:
        tb = T                                           # single block == full dims
    vmem_need = int(per_t * tb * 1.3) + (4 << 20)
    vmem_limit = int(max(32 << 20, min(int(0.7 * phys), vmem_need)))
    return int(tb), vmem_limit


@functools.partial(jax.jit, static_argnames=("temp",))
def _forward_direct(z1, z2, *, temp):
    B, T, D = z1.shape
    rows = 2 * B
    TB, vmem_limit = _choose_time_block(B, T, D)
    nT = -(-T // TB)
    kernel = functools.partial(_closs_kernel_direct, B=B, T=T, TB=TB, temp=temp)
    per_row = pl.pallas_call(
        kernel,
        out_shape=jax.ShapeDtypeStruct((rows, T), jnp.float32),
        grid_spec=pltpu.PrefetchScalarGridSpec(
            num_scalar_prefetch=0,
            grid=(nT,),
            in_specs=[pl.BlockSpec((B, TB, D), lambda t: (0, t, 0)),
                      pl.BlockSpec((B, TB, D), lambda t: (0, t, 0))],
            out_specs=pl.BlockSpec((rows, TB), lambda t: (0, t)),
        ),
        compiler_params=pltpu.CompilerParams(
            dimension_semantics=("parallel",),
            vmem_limit_bytes=vmem_limit),
    )(z1, z2)
    return jnp.sum(per_row) * jnp.float32(0.5 / (T * B))


@functools.partial(jax.jit, static_argnames=("temp",))
def _forward_slab(z1, z2, *, temp):
    B, T, D = z1.shape
    rows = 2 * B
    TB, vmem_limit = _choose_time_block(B, T, D)
    nT = -(-T // TB)
    # Single fused XLA repack (concat + transpose, no pad) -> (T, 2B, D).
    zt = jnp.transpose(jnp.concatenate([z1, z2], axis=0), (1, 0, 2))
    kernel = functools.partial(_closs_kernel_slab, B=B, T=T, TB=TB, temp=temp)
    per_row = pl.pallas_call(
        kernel,
        out_shape=jax.ShapeDtypeStruct((rows, T), jnp.float32),
        grid_spec=pltpu.PrefetchScalarGridSpec(
            num_scalar_prefetch=0,
            grid=(nT,),
            in_specs=[pl.BlockSpec((TB, rows, D), lambda t: (t, 0, 0))],
            out_specs=pl.BlockSpec((rows, TB), lambda t: (0, t)),
        ),
        compiler_params=pltpu.CompilerParams(
            dimension_semantics=("parallel",),
            vmem_limit_bytes=vmem_limit),
    )(zt)
    return jnp.sum(per_row) * jnp.float32(0.5 / (T * B))


_DIRECT_OK = None


def _direct_path_supported():
    """One-time capability probe for the zero-copy path (the in-kernel
    major<->sublane relayout).  Falls back to the fused-repack path if the
    probe fails to compile/run or disagrees numerically."""
    global _DIRECT_OK
    if _DIRECT_OK is None:
        try:
            k1, k2 = jax.random.split(jax.random.PRNGKey(1))
            a = jax.random.normal(k1, (4, 16, 128), dtype=jnp.float32)
            b = jax.random.normal(k2, (4, 16, 128), dtype=jnp.float32)
            got = float(_forward_direct(a, b, temp=1.0))
            want = float(_forward_slab(a, b, temp=1.0))
            _DIRECT_OK = abs(got - want) <= 1e-3 * max(1.0, abs(want))
        except Exception:
            _DIRECT_OK = False
    return _DIRECT_OK


def closs_forward(z1, z2, temp=1.0):
    """JAX/Pallas equivalent of CLoss.forward (== contrastive_loss).

    The reference's random batch permutations only permute duplicate softmax
    denominator columns, so the loss is permutation-invariant and no RNG is
    needed."""
    if _direct_path_supported():
        return _forward_direct(z1, z2, temp=float(temp))
    return _forward_slab(z1, z2, temp=float(temp))


def _reference_loss(z1, z2, temp=1.0, key=None):
    """Pure-JAX mirror of the PyTorch code (explicit permutations)."""
    if key is None:
        key = jax.random.PRNGKey(42)
    B, T, D = z1.shape
    k1, k2 = jax.random.split(key)
    uni_z1 = z1[jax.random.permutation(k1, B)]
    uni_z2 = z2[jax.random.permutation(k2, B)]
    z = jnp.concatenate([z1, z2, uni_z1, uni_z2], axis=0)
    z = jnp.transpose(z, (1, 0, 2))                              # (T, 4B, D)
    sim = jnp.einsum('tbd,tcd->tbc', z[:, :2 * B, :], z) / temp
    logits = jnp.tril(sim, k=-1)[:, :, :-1] + jnp.triu(sim, k=1)[:, :, 1:]
    logits = -jax.nn.log_softmax(logits, axis=-1)
    logits = logits[:, :2 * B, :2 * B - 1]
    i = jnp.arange(B)
    return (logits[:, i, B + i - 1].mean() + logits[:, B + i, i].mean()) / 2


if __name__ == "__main__":
    B, T, D = 4, 8, 32
    kz1, kz2 = jax.random.split(jax.random.PRNGKey(0))
    z1 = jax.random.normal(kz1, (B, T, D), dtype=jnp.float32)
    z2 = jax.random.normal(kz2, (B, T, D), dtype=jnp.float32)

    loss = closs_forward(z1, z2, temp=1.0)
    loss = jax.block_until_ready(loss)

    # Reference uses explicit permutations; the kernel is permutation-invariant.
    ref = _reference_loss(z1, z2, temp=1.0, key=jax.random.PRNGKey(42))
    assert bool(jnp.isfinite(loss)), loss
    assert jnp.allclose(loss, ref, rtol=5e-3, atol=5e-3), (loss, ref)

    print("KERNEL_OK")
</pallas_src>

<mosaic_0001>
module attributes {stable_mosaic.version = 11 : i64} {
  func.func @_closs_kernel_direct(%arg0: i32, %arg1: memref<4x16x128xf32, #tpu.memory_space<vmem>>, %arg2: memref<4x16x128xf32, #tpu.memory_space<vmem>>, %arg3: memref<8x16xf32, #tpu.memory_space<vmem>>) attributes {dimension_semantics = [#tpu.dimension_semantics<parallel>], iteration_bounds = array<i64: 1>, scalar_prefetch = 0 : i64, scratch_operands = 0 : i64, tpu.core_type = #tpu.core_type<tc>, window_params = [{transform_indices = @transform_0, window_bounds = array<i64: 4, 16, 128>}, {transform_indices = @transform_1, window_bounds = array<i64: 4, 16, 128>}, {transform_indices = @transform_2, window_bounds = array<i64: 8, 16>}]} {
    %c0 = arith.constant 0 : index
    %c0_0 = arith.constant 0 : index
    %c0_1 = arith.constant 0 : index
    %0 = vector.load %arg1[%c0, %c0_0, %c0_1] : memref<4x16x128xf32, #tpu.memory_space<vmem>>, vector<4x16x128xf32>
    %c0_2 = arith.constant 0 : index
    %c0_3 = arith.constant 0 : index
    %c0_4 = arith.constant 0 : index
    %1 = vector.load %arg2[%c0_2, %c0_3, %c0_4] : memref<4x16x128xf32, #tpu.memory_space<vmem>>, vector<4x16x128xf32>
    %2 = tpu.concatenate %0, %1 in 0 : vector<4x16x128xf32>, vector<4x16x128xf32> -> vector<8x16x128xf32>
    %3 = tpu.transpose %2, [1, 0, 2] : vector<8x16x128xf32> -> vector<16x8x128xf32>
    %cst = arith.constant 1.000000e+00 : f32
    %4 = vector.broadcast %cst : f32 to vector<16x8x128xf32>
    %5 = arith.mulf %3, %4 : vector<16x8x128xf32>
    "tpu.trace_start"() <{level = 10 : i32, message = "tid,tjd->tij"}> : () -> ()
    %cst_5 = arith.constant dense<0.000000e+00> : vector<16x8x8xf32>
    %6 = tpu.matmul %5, %3, %cst_5 {dimension_numbers = #tpu.dot_dimension_numbers<[2], [2], [1], [1], [0, 0, 0, 1, 1, 1], [0], [0]>} : vector<16x8x128xf32>, vector<16x8x128xf32>, vector<16x8x8xf32> -> vector<16x8x8xf32>
    "tpu.trace_stop"() : () -> ()
    %cst_6 = arith.constant dense<0xFF800000> : vector<16x8xf32>
    %7 = vector.multi_reduction <maximumf>, %6, %cst_6 [2] : vector<16x8x8xf32> to vector<16x8xf32>
    %8 = vector.shape_cast %7 : vector<16x8xf32> to vector<16x8x1xf32>
    %9 = vector.broadcast %8 : vector<16x8x1xf32> to vector<16x8x8xf32>
    %10 = arith.subf %6, %9 : vector<16x8x8xf32>
    %11 = math.exp %10 : vector<16x8x8xf32>
    %cst_7 = arith.constant dense<0.000000e+00> : vector<16x8xf32>
    %12 = vector.multi_reduction <add>, %11, %cst_7 [2] : vector<16x8x8xf32> to vector<16x8xf32>
    %13 = arith.mulf %5, %3 : vector<16x8x128xf32>
    %cst_8 = arith.constant dense<0.000000e+00> : vector<16x8xf32>
    %14 = vector.multi_reduction <add>, %13, %cst_8 [2] : vector<16x8x128xf32> to vector<16x8xf32>
    %cst_9 = arith.constant 2.000000e+00 : f32
    %15 = vector.broadcast %cst_9 : f32 to vector<16x8xf32>
    %16 = arith.mulf %15, %12 : vector<16x8xf32>
    %17 = arith.subf %14, %7 : vector<16x8xf32>
    %18 = math.exp %17 : vector<16x8xf32>
    %19 = arith.subf %16, %18 : vector<16x8xf32>
    %20 = math.log %19 : vector<16x8xf32>
    %21 = arith.addf %7, %20 : vector<16x8xf32>
    %22 = arith.mulf %0, %1 : vector<4x16x128xf32>
    %cst_10 = arith.constant dense<0.000000e+00> : vector<4x16xf32>
    %23 = vector.multi_reduction <add>, %22, %cst_10 [2] : vector<4x16x128xf32> to vector<4x16xf32>
    %cst_11 = arith.constant 1.000000e+00 : f32
    %24 = vector.broadcast %cst_11 : f32 to vector<4x16xf32>
    %25 = arith.mulf %23, %24 : vector<4x16xf32>
    %26 = tpu.concatenate %25, %25 in 0 : vector<4x16xf32>, vector<4x16xf32> -> vector<8x16xf32>
    %27 = tpu.transpose %21, [1, 0] : vector<16x8xf32> -> vector<8x16xf32>
    %28 = arith.subf %27, %26 : vector<8x16xf32>
    %c16_i32 = arith.constant 16 : i32
    %29 = arith.muli %arg0, %c16_i32 : i32
    %30 = tpu.iota {dimensions = array<i32: 1>} : vector<8x16xi32>
    %31 = vector.broadcast %29 : i32 to vector<8x16xi32>
    %32 = arith.addi %31, %30 : vector<8x16xi32>
    %c16_i32_12 = arith.constant 16 : i32
    %33 = vector.broadcast %c16_i32_12 : i32 to vector<8x16xi32>
    %34 = arith.cmpi slt, %32, %33 : vector<8x16xi32>
    %cst_13 = arith.constant 0.000000e+00 : f32
    %35 = vector.broadcast %cst_13 : f32 to vector<8x16xf32>
    %36 = arith.select %34, %28, %35 : vector<8x16xi1>, vector<8x16xf32>
    %c0_14 = arith.constant 0 : index
    %c0_15 = arith.constant 0 : index
    %37 = vector.load %arg3[%c0_14, %c0_15] : memref<8x16xf32, #tpu.memory_space<vmem>>, vector<8x16xf32>
    tpu.vector_store %arg3[%c0_14, %c0_15], %36 {strides = array<i32>} : memref<8x16xf32, #tpu.memory_space<vmem>>, vector<8x16xf32>,
    return
  }
  func.func @transform_0(%arg0: i32) -> (i32, i32, i32) {
    %c0_i32 = arith.constant 0 : i32
    %c0_i32_0 = arith.constant 0 : i32
    %c0_i32_1 = arith.constant 0 : i32
    return %c0_i32, %arg0, %c0_i32_0 : i32, i32, i32
  }
  func.func @transform_1(%arg0: i32) -> (i32, i32, i32) {
    %c0_i32 = arith.constant 0 : i32
    %c0_i32_0 = arith.constant 0 : i32
    %c0_i32_1 = arith.constant 0 : i32
    return %c0_i32, %arg0, %c0_i32_0 : i32, i32, i32
  }
  func.func @transform_2(%arg0: i32) -> (i32, i32) {
    %c0_i32 = arith.constant 0 : i32
    %c0_i32_0 = arith.constant 0 : i32
    return %c0_i32, %arg0 : i32, i32
  }
}

module attributes {stable_mosaic.version = 11 : i64} {
  func.func @_closs_kernel_slab(%arg0: i32, %arg1: memref<8x8x32xf32, #tpu.memory_space<vmem>>, %arg2: memref<8x8xf32, #tpu.memory_space<vmem>>) attributes {dimension_semantics = [#tpu.dimension_semantics<parallel>], iteration_bounds = array<i64: 1>, scalar_prefetch = 0 : i64, scratch_operands = 0 : i64, tpu.core_type = #tpu.core_type<tc>, window_params = [{transform_indices = @transform_0, window_bounds = array<i64: 8, 8, 32>}, {transform_indices = @transform_1, window_bounds = array<i64: 8, 8>}]} {
    %c0 = arith.constant 0 : index
    %c0_0 = arith.constant 0 : index
    %c0_1 = arith.constant 0 : index
    %0 = vector.load %arg1[%c0, %c0_0, %c0_1] : memref<8x8x32xf32, #tpu.memory_space<vmem>>, vector<8x8x32xf32>
    %cst = arith.constant 1.000000e+00 : f32
    %1 = vector.broadcast %cst : f32 to vector<8x8x32xf32>
    %2 = arith.mulf %0, %1 : vector<8x8x32xf32>
    "tpu.trace_start"() <{level = 10 : i32, message = "tid,tjd->tij"}> : () -> ()
    %cst_2 = arith.constant dense<0.000000e+00> : vector<8x8x8xf32>
    %3 = tpu.matmul %2, %0, %cst_2 {dimension_numbers = #tpu.dot_dimension_numbers<[2], [2], [1], [1], [0, 0, 0, 1, 1, 1], [0], [0]>} : vector<8x8x32xf32>, vector<8x8x32xf32>, vector<8x8x8xf32> -> vector<8x8x8xf32>
    "tpu.trace_stop"() : () -> ()
    %cst_3 = arith.constant dense<0xFF800000> : vector<8x8xf32>
    %4 = vector.multi_reduction <maximumf>, %3, %cst_3 [2] : vector<8x8x8xf32> to vector<8x8xf32>
    %5 = vector.shape_cast %4 : vector<8x8xf32> to vector<8x8x1xf32>
    %6 = vector.broadcast %5 : vector<8x8x1xf32> to vector<8x8x8xf32>
    %7 = arith.subf %3, %6 : vector<8x8x8xf32>
    %8 = math.exp %7 : vector<8x8x8xf32>
    %cst_4 = arith.constant dense<0.000000e+00> : vector<8x8xf32>
    %9 = vector.multi_reduction <add>, %8, %cst_4 [2] : vector<8x8x8xf32> to vector<8x8xf32>
    %10 = arith.mulf %2, %0 : vector<8x8x32xf32>
    %cst_5 = arith.constant dense<0.000000e+00> : vector<8x8xf32>
    %11 = vector.multi_reduction <add>, %10, %cst_5 [2] : vector<8x8x32xf32> to vector<8x8xf32>
    %cst_6 = arith.constant 2.000000e+00 : f32
    %12 = vector.broadcast %cst_6 : f32 to vector<8x8xf32>
    %13 = arith.mulf %12, %9 : vector<8x8xf32>
    %14 = arith.subf %11, %4 : vector<8x8xf32>
    %15 = math.exp %14 : vector<8x8xf32>
    %16 = arith.subf %13, %15 : vector<8x8xf32>
    %17 = math.log %16 : vector<8x8xf32>
    %18 = arith.addf %4, %17 : vector<8x8xf32>
    %19 = vector.extract_strided_slice %2 {offsets = [0, 0, 0], sizes = [8, 4, 32], strides = [1, 1, 1]} : vector<8x8x32xf32> to vector<8x4x32xf32>
    %20 = vector.extract_strided_slice %0 {offsets = [0, 4, 0], sizes = [8, 4, 32], strides = [1, 1, 1]} : vector<8x8x32xf32> to vector<8x4x32xf32>
    %21 = arith.mulf %19, %20 : vector<8x4x32xf32>
    %cst_7 = arith.constant dense<0.000000e+00> : vector<8x4xf32>
    %22 = vector.multi_reduction <add>, %21, %cst_7 [2] : vector<8x4x32xf32> to vector<8x4xf32>
    %23 = tpu.transpose %22, [1, 0] : vector<8x4xf32> -> vector<4x8xf32>
    %24 = tpu.concatenate %23, %23 in 0 : vector<4x8xf32>, vector<4x8xf32> -> vector<8x8xf32>
    %25 = tpu.transpose %18, [1, 0] : vector<8x8xf32> -> vector<8x8xf32>
    %26 = arith.subf %25, %24 : vector<8x8xf32>
    %c8_i32 = arith.constant 8 : i32
    %27 = arith.muli %arg0, %c8_i32 : i32
    %28 = tpu.iota {dimensions = array<i32: 1>} : vector<8x8xi32>
    %29 = vector.broadcast %27 : i32 to vector<8x8xi32>
    %30 = arith.addi %29, %28 : vector<8x8xi32>
    %c8_i32_8 = arith.constant 8 : i32
    %31 = vector.broadcast %c8_i32_8 : i32 to vector<8x8xi32>
    %32 = arith.cmpi slt, %30, %31 : vector<8x8xi32>
    %cst_9 = arith.constant 0.000000e+00 : f32
    %33 = vector.broadcast %cst_9 : f32 to vector<8x8xf32>
    %34 = arith.select %32, %26, %33 : vector<8x8xi1>, vector<8x8xf32>
    %c0_10 = arith.constant 0 : index
    %c0_11 = arith.constant 0 : index
    %35 = vector.load %arg2[%c0_10, %c0_11] : memref<8x8xf32, #tpu.memory_space<vmem>>, vector<8x8xf32>
    tpu.vector_store %arg2[%c0_10, %c0_11], %34 {strides = array<i32>} : memref<8x8xf32, #tpu.memory_space<vmem>>, vector<8x8xf32>,
    return
  }
  func.func @transform_0(%arg0: i32) -> (i32, i32, i32) {
    %c0_i32 = arith.constant 0 : i32
    %c0_i32_0 = arith.constant 0 : i32
    %c0_i32_1 = arith.constant 0 : i32
    return %arg0, %c0_i32, %c0_i32_0 : i32, i32, i32
  }
  func.func @transform_1(%arg0: i32) -> (i32, i32) {
    %c0_i32 = arith.constant 0 : i32
    %c0_i32_0 = arith.constant 0 : i32
    return %c0_i32, %arg0 : i32, i32
  }
}

</mosaic_0001>

<llo_original>
// kernel: _forward_direct.1
$region0: #{_forward_direct.1}
  #allocation0 [shape = 'u32[]', space=smem, size = 0x4, offset = 0x4, fixed_abs, tag = 'smem constant byte address 0x4 - core index']
  #allocation1 [shape = 'u32[72,128]{1,0:T(1,128)}', space=vmem, size = 0x9000, scoped, tag = 'internal scratch']
  %s0 = inlined_call_operand.hbm [shape: f32[4,16,128], index: 0, kind: input, shape index: {}]
  %s1 = inlined_call_operand.hbm [shape: f32[4,16,128], index: 1, kind: input, shape index: {}]
  %s2 = inlined_call_operand.vmem [shape: f32[8,16], index: 2, kind: output, shape index: {}]
  %s3 = sld [smem:[#allocation0]]
  $region26: #{_forward_direct.1} parent=0
    _
  %s5 = ssub.s32 1, %s3
  %s6 = scalar_select 0, %s5, %s3
  $region1: #{_forward_direct.1} parent=0
    #allocation2 [shape = 'u8[32768]{0}', space=vmem, size = 0x8000, scoped, tag = 'input window, operand 0, single buffered']
    #allocation3 [shape = 's32[1]{0}', space=sflag, size = 0x4, scoped, tag = 'scoped memory for _forward_direct.1']
    #allocation4 [shape = 'u8[32768]{0}', space=vmem, size = 0x8000, scoped, tag = 'input window, operand 1, single buffered']
    #allocation5 [shape = 's32[1]{0}', space=sflag, size = 0x4, scoped, tag = 'scoped memory for _forward_direct.1']
    %7 = vsyncpa [#allocation3], 0
    %8 = vsyncpa [#allocation5], 0
    // Predicated region
    $region2: #{_forward_direct.1} parent=1 // pred_check
      _
    $region3: #{_forward_direct.1} parent=1 // pred_check_branch
      %10 = sbr.rel (0) target = $region5
    $region4: #{_forward_direct.1} parent=1 // pred_region
      %12 = vsyncadd [#allocation3], 0
      %s13 = sshll.u32 %s0, 4
      %s14 = int_to_ptr.hbm [resolvable:$true] %s13
      %s15 = sshll.u32 [#allocation2], 4
      %s16 = int_to_ptr.vmem [resolvable:$true] %s15
      %21 = dma.hbm_to_vmem [thread:$0]  %s14, 1024, %s16, [#allocation3], 128, 128, 8
    $region5: #{_forward_direct.1} parent=1 // pred_fallthru
      _
    // Predicated region
    $region6: #{_forward_direct.1} parent=1 // pred_check
      _
    $region7: #{_forward_direct.1} parent=1 // pred_check_branch
      %23 = sbr.rel (0) target = $region9
    $region8: #{_forward_direct.1} parent=1 // pred_region
      %25 = vsyncadd [#allocation5], 0
      %s26 = sshll.u32 %s1, 4
      %s27 = int_to_ptr.hbm [resolvable:$true] %s26
      %s28 = sshll.u32 [#allocation4], 4
      %s29 = int_to_ptr.vmem [resolvable:$true] %s28
      %34 = dma.hbm_to_vmem [thread:$0]  %s27, 1024, %s29, [#allocation5], 128, 128, 8
    $region9: #{_forward_direct.1} parent=1 // pred_fallthru
      _
    // Predicated region
    $region10: #{_forward_direct.1} parent=1 // pred_check
      _
    $region11: #{_forward_direct.1} parent=1 // pred_check_branch
      %36 = sbr.rel (0) target = $region13
    $region12: #{_forward_direct.1} parent=1 // pred_region
      %38 = dma.done [#allocation3], 1024
    $region13: #{_forward_direct.1} parent=1 // pred_fallthru
      _
    // Predicated region
    $region14: #{_forward_direct.1} parent=1 // pred_check
      _
    $region15: #{_forward_direct.1} parent=1 // pred_check_branch
      %40 = sbr.rel (0) target = $region17
    $region16: #{_forward_direct.1} parent=1 // pred_region
      %42 = dma.done [#allocation5], 1024
    $region17: #{_forward_direct.1} parent=1 // pred_fallthru
      _
    %v43 = vld [vmem:[#allocation2] sm:$0xff]
    %v44 = vld [vmem:[#allocation2 + $0x8] sm:$0xff]
    %v45 = vld [vmem:[#allocation2 + $0x10] sm:$0xff]
    %v46 = vld [vmem:[#allocation2 + $0x18] sm:$0xff]
    %v47 = vld [vmem:[#allocation2 + $0x20] sm:$0xff]
    %v48 = vld [vmem:[#allocation2 + $0x28] sm:$0xff]
    %v49 = vld [vmem:[#allocation2 + $0x30] sm:$0xff]
    %v50 = vld [vmem:[#allocation2 + $0x38] sm:$0xff]
    %v51 = vld [vmem:[#allocation4] sm:$0xff]
    %v52 = vld [vmem:[#allocation4 + $0x8] sm:$0xff]
    %v53 = vld [vmem:[#allocation4 + $0x10] sm:$0xff]
    %v54 = vld [vmem:[#allocation4 + $0x18] sm:$0xff]
    %v55 = vld [vmem:[#allocation4 + $0x20] sm:$0xff]
    %v56 = vld [vmem:[#allocation4 + $0x28] sm:$0xff]
    %v57 = vld [vmem:[#allocation4 + $0x30] sm:$0xff]
    %v58 = vld [vmem:[#allocation4 + $0x38] sm:$0xff]
    %v59 = vrot.slane %v47, 4
    %vm60 = vcmask 1047556
    %v61 = vsel %vm60, %v59, %v43
    %v62 = vrot.slane %v43, 4
    %v63 = vsel %vm60, %v47, %v62
    %v65 = vunpack.c.l.s4 1983009808
    %v66 = vunpack.c.0.s8 %v65
    %v67 = vperm.slane %v61, %v66
    %v69 = vunpack.c.l.s4 1983009808
    %v70 = vunpack.c.0.s8 %v69
    %v71 = vperm.slane %v63, %v70
    %v72 = vrot.slane %v49, 4
    %v73 = vsel %vm60, %v72, %v45
    %v74 = vrot.slane %v45, 4
    %v75 = vsel %vm60, %v49, %v74
    %v77 = vunpack.c.l.s4 1983009808
    %v78 = vunpack.c.0.s8 %v77
    %v79 = vperm.slane %v73, %v78
    %v81 = vunpack.c.l.s4 1983009808
    %v82 = vunpack.c.0.s8 %v81
    %v83 = vperm.slane %v75, %v82
    %v84 = vrot.slane %v55, 4
    %v85 = vsel %vm60, %v84, %v51
    %v86 = vrot.slane %v51, 4
    %v87 = vsel %vm60, %v55, %v86
    %v89 = vunpack.c.l.s4 1983009808
    %v90 = vunpack.c.0.s8 %v89
    %v91 = vperm.slane %v85, %v90
    %v93 = vunpack.c.l.s4 1983009808
    %v94 = vunpack.c.0.s8 %v93
    %v95 = vperm.slane %v87, %v94
    %v96 = vrot.slane %v57, 4
    %v97 = vsel %vm60, %v96, %v53
    %v98 = vrot.slane %v53, 4
    %v99 = vsel %vm60, %v57, %v98
    %v101 = vunpack.c.l.s4 1983009808
    %v102 = vunpack.c.0.s8 %v101
    %v103 = vperm.slane %v97, %v102
    %v105 = vunpack.c.l.s4 1983009808
    %v106 = vunpack.c.0.s8 %v105
    %v107 = vperm.slane %v99, %v106
    %v108 = vrot.slane %v79, 4
    %v109 = vsel %vm60, %v108, %v67
    %v110 = vrot.slane %v67, 4
    %v111 = vsel %vm60, %v79, %v110
    %v113 = vunpack.c.l.s4 1934713408
    %v114 = vunpack.c.0.s8 %v113
    %v115 = vperm.slane %v109, %v114
    %v117 = vunpack.c.l.s4 1934713408
    %v118 = vunpack.c.0.s8 %v117
    %v119 = vperm.slane %v111, %v118
    %v120 = vrot.slane %v83, 4
    %v121 = vsel %vm60, %v120, %v71
    %v122 = vrot.slane %v71, 4
    %v123 = vsel %vm60, %v83, %v122
    %v125 = vunpack.c.l.s4 1934713408
    %v126 = vunpack.c.0.s8 %v125
    %v127 = vperm.slane %v121, %v126
    %v129 = vunpack.c.l.s4 1934713408
    %v130 = vunpack.c.0.s8 %v129
    %v131 = vperm.slane %v123, %v130
    %v132 = vrot.slane %v103, 4
    %v133 = vsel %vm60, %v132, %v91
    %v134 = vrot.slane %v91, 4
    %v135 = vsel %vm60, %v103, %v134
    %v137 = vunpack.c.l.s4 1934713408
    %v138 = vunpack.c.0.s8 %v137
    %v139 = vperm.slane %v133, %v138
    %v141 = vunpack.c.l.s4 1934713408
    %v142 = vunpack.c.0.s8 %v141
    %v143 = vperm.slane %v135, %v142
    %v144 = vrot.slane %v107, 4
    %v145 = vsel %vm60, %v144, %v95
    %v146 = vrot.slane %v95, 4
    %v147 = vsel %vm60, %v107, %v146
    %v149 = vunpack.c.l.s4 1934713408
    %v150 = vunpack.c.0.s8 %v149
    %v151 = vperm.slane %v145, %v150
    %v153 = vunpack.c.l.s4 1934713408
    %v154 = vunpack.c.0.s8 %v153
    %v155 = vperm.slane %v147, %v154
    %v156 = vrot.slane %v139, 4
    %v157 = vsel %vm60, %v156, %v115
    %v158 = vrot.slane %v115, 4
    %v159 = vsel %vm60, %v139, %v158
    %v160 = vrot.slane %v143, 4
    %v161 = vsel %vm60, %v160, %v119
    %v162 = vrot.slane %v119, 4
    %v163 = vsel %vm60, %v143, %v162
    %v164 = vrot.slane %v151, 4
    %v165 = vsel %vm60, %v164, %v127
    %v166 = vrot.slane %v127, 4
    %v167 = vsel %vm60, %v151, %v166
    %v168 = vrot.slane %v155, 4
    %v169 = vsel %vm60, %v168, %v131
    %v170 = vrot.slane %v131, 4
    %v171 = vsel %vm60, %v155, %v170
    %v172 = vrot.slane %v48, 4
    %v173 = vsel %vm60, %v172, %v44
    %v174 = vrot.slane %v44, 4
    %v175 = vsel %vm60, %v48, %v174
    %v177 = vunpack.c.l.s4 1983009808
    %v178 = vunpack.c.0.s8 %v177
    %v179 = vperm.slane %v173, %v178
    %v181 = vunpack.c.l.s4 1983009808
    %v182 = vunpack.c.0.s8 %v181
    %v183 = vperm.slane %v175, %v182
    %v184 = vrot.slane %v50, 4
    %v185 = vsel %vm60, %v184, %v46
    %v186 = vrot.slane %v46, 4
    %v187 = vsel %vm60, %v50, %v186
    %v189 = vunpack.c.l.s4 1983009808
    %v190 = vunpack.c.0.s8 %v189
    %v191 = vperm.slane %v185, %v190
    %v193 = vunpack.c.l.s4 1983009808
    %v194 = vunpack.c.0.s8 %v193
    %v195 = vperm.slane %v187, %v194
    %v196 = vrot.slane %v56, 4
    %v197 = vsel %vm60, %v196, %v52
    %v198 = vrot.slane %v52, 4
    %v199 = vsel %vm60, %v56, %v198
    %v201 = vunpack.c.l.s4 1983009808
    %v202 = vunpack.c.0.s8 %v201
    %v203 = vperm.slane %v197, %v202
    %v205 = vunpack.c.l.s4 1983009808
    %v206 = vunpack.c.0.s8 %v205
    %v207 = vperm.slane %v199, %v206
    %v208 = vrot.slane %v58, 4
    %v209 = vsel %vm60, %v208, %v54
    %v210 = vrot.slane %v54, 4
    %v211 = vsel %vm60, %v58, %v210
    %v213 = vunpack.c.l.s4 1983009808
    %v214 = vunpack.c.0.s8 %v213
    %v215 = vperm.slane %v209, %v214
    %v217 = vunpack.c.l.s4 1983009808
    %v218 = vunpack.c.0.s8 %v217
    %v219 = vperm.slane %v211, %v218
    %v220 = vrot.slane %v191, 4
    %v221 = vsel %vm60, %v220, %v179
    %v222 = vrot.slane %v179, 4
    %v223 = vsel %vm60, %v191, %v222
    %v225 = vunpack.c.l.s4 1934713408
    %v226 = vunpack.c.0.s8 %v225
    %v227 = vperm.slane %v221, %v226
    %v229 = vunpack.c.l.s4 1934713408
    %v230 = vunpack.c.0.s8 %v229
    %v231 = vperm.slane %v223, %v230
    %v232 = vrot.slane %v195, 4
    %v233 = vsel %vm60, %v232, %v183
    %v234 = vrot.slane %v183, 4
    %v235 = vsel %vm60, %v195, %v234
    %v237 = vunpack.c.l.s4 1934713408
    %v238 = vunpack.c.0.s8 %v237
    %v239 = vperm.slane %v233, %v238
    %v241 = vunpack.c.l.s4 1934713408
    %v242 = vunpack.c.0.s8 %v241
    %v243 = vperm.slane %v235, %v242
    %v244 = vrot.slane %v215, 4
    %v245 = vsel %vm60, %v244, %v203
    %v246 = vrot.slane %v203, 4
    %v247 = vsel %vm60, %v215, %v246
    %v249 = vunpack.c.l.s4 1934713408
    %v250 = vunpack.c.0.s8 %v249
    %v251 = vperm.slane %v245, %v250
    %v253 = vunpack.c.l.s4 1934713408
    %v254 = vunpack.c.0.s8 %v253
    %v255 = vperm.slane %v247, %v254
    %v256 = vrot.slane %v219, 4
    %v257 = vsel %vm60, %v256, %v207
    %v258 = vrot.slane %v207, 4
    %v259 = vsel %vm60, %v219, %v258
    %v261 = vunpack.c.l.s4 1934713408
    %v262 = vunpack.c.0.s8 %v261
    %v263 = vperm.slane %v257, %v262
    %v265 = vunpack.c.l.s4 1934713408
    %v266 = vunpack.c.0.s8 %v265
    %v267 = vperm.slane %v259, %v266
    %v268 = vrot.slane %v251, 4
    %v269 = vsel %vm60, %v268, %v227
    %v270 = vrot.slane %v227, 4
    %v271 = vsel %vm60, %v251, %v270
    %v272 = vrot.slane %v255, 4
    %v273 = vsel %vm60, %v272, %v231
    %v274 = vrot.slane %v231, 4
    %v275 = vsel %vm60, %v255, %v274
    %v276 = vrot.slane %v263, 4
    %v277 = vsel %vm60, %v276, %v239
    %v278 = vrot.slane %v239, 4
    %v279 = vsel %vm60, %v263, %v278
    %v280 = vrot.slane %v267, 4
    %v281 = vsel %vm60, %v280, %v243
    %v282 = vrot.slane %v243, 4
    %v283 = vsel %vm60, %v267, %v282
    %284 = vmatpush.xpose.msra.mxu0 0.0
    %285 = vmatpush.xpose.msra.mxu0 0.0
    %286 = vmatpush.xpose.msra.mxu0 0.0
    %287 = vmatpush.xpose.msra.mxu0 0.0
    %288 = vmatpush.xpose.msra.mxu0 0.0
    %289 = vmatpush.xpose.msra.mxu0 0.0
    %290 = vmatpush.xpose.msra.mxu0 0.0
    %291 = vmatpush.xpose.msra.mxu0 0.0
    %292 = vmatpush.xpose.msra.mxu0 0.0
    %293 = vmatpush.xpose.msra.mxu0 0.0
    %294 = vmatpush.xpose.msra.mxu0 0.0
    %295 = vmatpush.xpose.msra.mxu0 0.0
    %296 = vmatpush.xpose.msra.mxu0 0.0
    %297 = vmatpush.xpose.msra.mxu0 0.0
    %298 = vmatpush.xpose.msra.mxu0 0.0
    %299 = vmatpush.xpose.msra.mxu0 %v157
    %300 = vmatmul.f32.gmra.mxu0 %v157
    %v301 = vpop.f32.mrf.mxu0
    %v302 = vadd.f32 0.0, %v301
    %303 = vdwg.mxu0
    %304 = vmatpush.xpose.msra.mxu0 0.0
    %305 = vmatpush.xpose.msra.mxu0 0.0
    %306 = vmatpush.xpose.msra.mxu0 0.0
    %307 = vmatpush.xpose.msra.mxu0 0.0
    %308 = vmatpush.xpose.msra.mxu0 0.0
    %309 = vmatpush.xpose.msra.mxu0 0.0
    %310 = vmatpush.xpose.msra.mxu0 0.0
    %311 = vmatpush.xpose.msra.mxu0 0.0
    %312 = vmatpush.xpose.msra.mxu0 0.0
    %313 = vmatpush.xpose.msra.mxu0 0.0
    %314 = vmatpush.xpose.msra.mxu0 0.0
    %315 = vmatpush.xpose.msra.mxu0 0.0
    %316 = vmatpush.xpose.msra.mxu0 0.0
    %317 = vmatpush.xpose.msra.mxu0 0.0
    %318 = vmatpush.xpose.msra.mxu0 0.0
    %319 = vmatpush.xpose.msra.mxu0 %v159
    %320 = vmatmul.f32.gmra.mxu0 %v159
    %v321 = vpop.f32.mrf.mxu0
    %v322 = vadd.f32 0.0, %v321
    %323 = vdwg.mxu0
    %324 = vmatpush.xpose.msra.mxu0 0.0
    %325 = vmatpush.xpose.msra.mxu0 0.0
    %326 = vmatpush.xpose.msra.mxu0 0.0
    %327 = vmatpush.xpose.msra.mxu0 0.0
    %328 = vmatpush.xpose.msra.mxu0 0.0
    %329 = vmatpush.xpose.msra.mxu0 0.0
    %330 = vmatpush.xpose.msra.mxu0 0.0
    %331 = vmatpush.xpose.msra.mxu0 0.0
    %332 = vmatpush.xpose.msra.mxu0 0.0
    %333 = vmatpush.xpose.msra.mxu0 0.0
    %334 = vmatpush.xpose.msra.mxu0 0.0
    %335 = vmatpush.xpose.msra.mxu0 0.0
    %336 = vmatpush.xpose.msra.mxu0 0.0
    %337 = vmatpush.xpose.msra.mxu0 0.0
    %338 = vmatpush.xpose.msra.mxu0 0.0
    %339 = vmatpush.xpose.msra.mxu0 %v161
    %340 = vmatmul.f32.gmra.mxu0 %v161
    %v341 = vpop.f32.mrf.mxu0
    %v342 = vadd.f32 0.0, %v341
    %343 = vdwg.mxu0
    %344 = vmatpush.xpose.msra.mxu0 0.0
    %345 = vmatpush.xpose.msra.mxu0 0.0
    %346 = vmatpush.xpose.msra.mxu0 0.0
    %347 = vmatpush.xpose.msra.mxu0 0.0
    %348 = vmatpush.xpose.msra.mxu0 0.0
    %349 = vmatpush.xpose.msra.mxu0 0.0
    %350 = vmatpush.xpose.msra.mxu0 0.0
    %351 = vmatpush.xpose.msra.mxu0 0.0
    %352 = vmatpush.xpose.msra.mxu0 0.0
    %353 = vmatpush.xpose.msra.mxu0 0.0
    %354 = vmatpush.xpose.msra.mxu0 0.0
    %355 = vmatpush.xpose.msra.mxu0 0.0
    %356 = vmatpush.xpose.msra.mxu0 0.0
    %357 = vmatpush.xpose.msra.mxu0 0.0
    %358 = vmatpush.xpose.msra.mxu0 0.0
    %359 = vmatpush.xpose.msra.mxu0 %v163
    %360 = vmatmul.f32.gmra.mxu0 %v163
    %v361 = vpop.f32.mrf.mxu0
    %v362 = vadd.f32 0.0, %v361
    %363 = vdwg.mxu0
    %364 = vmatpush.xpose.msra.mxu0 0.0
    %365 = vmatpush.xpose.msra.mxu0 0.0
    %366 = vmatpush.xpose.msra.mxu0 0.0
    %367 = vmatpush.xpose.msra.mxu0 0.0
    %368 = vmatpush.xpose.msra.mxu0 0.0
    %369 = vmatpush.xpose.msra.mxu0 0.0
    %370 = vmatpush.xpose.msra.mxu0 0.0
    %371 = vmatpush.xpose.msra.mxu0 0.0
    %372 = vmatpush.xpose.msra.mxu0 0.0
    %373 = vmatpush.xpose.msra.mxu0 0.0
    %374 = vmatpush.xpose.msra.mxu0 0.0
    %375 = vmatpush.xpose.msra.mxu0 0.0
    %376 = vmatpush.xpose.msra.mxu0 0.0
    %377 = vmatpush.xpose.msra.mxu0 0.0
    %378 = vmatpush.xpose.msra.mxu0 0.0
    %379 = vmatpush.xpose.msra.mxu0 %v165
    %380 = vmatmul.f32.gmra.mxu0 %v165
    %v381 = vpop.f32.mrf.mxu0
    %v382 = vadd.f32 0.0, %v381
    %383 = vdwg.mxu0
    %384 = vmatpush.xpose.msra.mxu0 0.0
    %385 = vmatpush.xpose.msra.mxu0 0.0
    %386 = vmatpush.xpose.msra.mxu0 0.0
    %387 = vmatpush.xpose.msra.mxu0 0.0
    %388 = vmatpush.xpose.msra.mxu0 0.0
    %389 = vmatpush.xpose.msra.mxu0 0.0
    %390 = vmatpush.xpose.msra.mxu0 0.0
    %391 = vmatpush.xpose.msra.mxu0 0.0
    %392 = vmatpush.xpose.msra.mxu0 0.0
    %393 = vmatpush.xpose.msra.mxu0 0.0
    %394 = vmatpush.xpose.msra.mxu0 0.0
    %395 = vmatpush.xpose.msra.mxu0 0.0
    %396 = vmatpush.xpose.msra.mxu0 0.0
    %397 = vmatpush.xpose.msra.mxu0 0.0
    %398 = vmatpush.xpose.msra.mxu0 0.0
    %399 = vmatpush.xpose.msra.mxu0 %v167
    %400 = vmatmul.f32.gmra.mxu0 %v167
    %v401 = vpop.f32.mrf.mxu0
    %v402 = vadd.f32 0.0, %v401
    %403 = vdwg.mxu0
    %404 = vmatpush.xpose.msra.mxu0 0.0
    %405 = vmatpush.xpose.msra.mxu0 0.0
    %406 = vmatpush.xpose.msra.mxu0 0.0
    %407 = vmatpush.xpose.msra.mxu0 0.0
    %408 = vmatpush.xpose.msra.mxu0 0.0
    %409 = vmatpush.xpose.msra.mxu0 0.0
    %410 = vmatpush.xpose.msra.mxu0 0.0
    %411 = vmatpush.xpose.msra.mxu0 0.0
    %412 = vmatpush.xpose.msra.mxu0 0.0
    %413 = vmatpush.xpose.msra.mxu0 0.0
    %414 = vmatpush.xpose.msra.mxu0 0.0
    %415 = vmatpush.xpose.msra.mxu0 0.0
    %416 = vmatpush.xpose.msra.mxu0 0.0
    %417 = vmatpush.xpose.msra.mxu0 0.0
    %418 = vmatpush.xpose.msra.mxu0 0.0
    %419 = vmatpush.xpose.msra.mxu0 %v169
    %420 = vmatmul.f32.gmra.mxu0 %v169
    %v421 = vpop.f32.mrf.mxu0
    %v422 = vadd.f32 0.0, %v421
    %423 = vdwg.mxu0
    %424 = vmatpush.xpose.msra.mxu0 0.0
    %425 = vmatpush.xpose.msra.mxu0 0.0
    %426 = vmatpush.xpose.msra.mxu0 0.0
    %427 = vmatpush.xpose.msra.mxu0 0.0
    %428 = vmatpush.xpose.msra.mxu0 0.0
    %429 = vmatpush.xpose.msra.mxu0 0.0
    %430 = vmatpush.xpose.msra.mxu0 0.0
    %431 = vmatpush.xpose.msra.mxu0 0.0
    %432 = vmatpush.xpose.msra.mxu0 0.0
    %433 = vmatpush.xpose.msra.mxu0 0.0
    %434 = vmatpush.xpose.msra.mxu0 0.0
    %435 = vmatpush.xpose.msra.mxu0 0.0
    %436 = vmatpush.xpose.msra.mxu0 0.0
    %437 = vmatpush.xpose.msra.mxu0 0.0
    %438 = vmatpush.xpose.msra.mxu0 0.0
    %439 = vmatpush.xpose.msra.mxu0 %v171
    %440 = vmatmul.f32.gmra.mxu0 %v171
    %v441 = vpop.f32.mrf.mxu0
    %v442 = vadd.f32 0.0, %v441
    %443 = vdwg.mxu0
    %444 = vmatpush.xpose.msra.mxu0 0.0
    %445 = vmatpush.xpose.msra.mxu0 0.0
    %446 = vmatpush.xpose.msra.mxu0 0.0
    %447 = vmatpush.xpose.msra.mxu0 0.0
    %448 = vmatpush.xpose.msra.mxu0 0.0
    %449 = vmatpush.xpose.msra.mxu0 0.0
    %450 = vmatpush.xpose.msra.mxu0 0.0
    %451 = vmatpush.xpose.msra.mxu0 0.0
    %452 = vmatpush.xpose.msra.mxu0 0.0
    %453 = vmatpush.xpose.msra.mxu0 0.0
    %454 = vmatpush.xpose.msra.mxu0 0.0
    %455 = vmatpush.xpose.msra.mxu0 0.0
    %456 = vmatpush.xpose.msra.mxu0 0.0
    %457 = vmatpush.xpose.msra.mxu0 0.0
    %458 = vmatpush.xpose.msra.mxu0 0.0
    %459 = vmatpush.xpose.msra.mxu0 %v269
    %460 = vmatmul.f32.gmra.mxu0 %v269
    %v461 = vpop.f32.mrf.mxu0
    %v462 = vadd.f32 0.0, %v461
    %463 = vdwg.mxu0
    %464 = vmatpush.xpose.msra.mxu0 0.0
    %465 = vmatpush.xpose.msra.mxu0 0.0
    %466 = vmatpush.xpose.msra.mxu0 0.0
    %467 = vmatpush.xpose.msra.mxu0 0.0
    %468 = vmatpush.xpose.msra.mxu0 0.0
    %469 = vmatpush.xpose.msra.mxu0 0.0
    %470 = vmatpush.xpose.msra.mxu0 0.0
    %471 = vmatpush.xpose.msra.mxu0 0.0
    %472 = vmatpush.xpose.msra.mxu0 0.0
    %473 = vmatpush.xpose.msra.mxu0 0.0
    %474 = vmatpush.xpose.msra.mxu0 0.0
    %475 = vmatpush.xpose.msra.mxu0 0.0
    %476 = vmatpush.xpose.msra.mxu0 0.0
    %477 = vmatpush.xpose.msra.mxu0 0.0
    %478 = vmatpush.xpose.msra.mxu0 0.0
    %479 = vmatpush.xpose.msra.mxu0 %v271
    %480 = vmatmul.f32.gmra.mxu0 %v271
    %v481 = vpop.f32.mrf.mxu0
    %v482 = vadd.f32 0.0, %v481
    %483 = vdwg.mxu0
    %484 = vmatpush.xpose.msra.mxu0 0.0
    %485 = vmatpush.xpose.msra.mxu0 0.0
    %486 = vmatpush.xpose.msra.mxu0 0.0
    %487 = vmatpush.xpose.msra.mxu0 0.0
    %488 = vmatpush.xpose.msra.mxu0 0.0
    %489 = vmatpush.xpose.msra.mxu0 0.0
    %490 = vmatpush.xpose.msra.mxu0 0.0
    %491 = vmatpush.xpose.msra.mxu0 0.0
    %492 = vmatpush.xpose.msra.mxu0 0.0
    %493 = vmatpush.xpose.msra.mxu0 0.0
    %494 = vmatpush.xpose.msra.mxu0 0.0
    %495 = vmatpush.xpose.msra.mxu0 0.0
    %496 = vmatpush.xpose.msra.mxu0 0.0
    %497 = vmatpush.xpose.msra.mxu0 0.0
    %498 = vmatpush.xpose.msra.mxu0 0.0
    %499 = vmatpush.xpose.msra.mxu0 %v273
    %500 = vmatmul.f32.gmra.mxu0 %v273
    %v501 = vpop.f32.mrf.mxu0
    %v502 = vadd.f32 0.0, %v501
    %503 = vdwg.mxu0
    %504 = vmatpush.xpose.msra.mxu0 0.0
    %505 = vmatpush.xpose.msra.mxu0 0.0
    %506 = vmatpush.xpose.msra.mxu0 0.0
    %507 = vmatpush.xpose.msra.mxu0 0.0
    %508 = vmatpush.xpose.msra.mxu0 0.0
    %509 = vmatpush.xpose.msra.mxu0 0.0
    %510 = vmatpush.xpose.msra.mxu0 0.0
    %511 = vmatpush.xpose.msra.mxu0 0.0
    %512 = vmatpush.xpose.msra.mxu0 0.0
    %513 = vmatpush.xpose.msra.mxu0 0.0
    %514 = vmatpush.xpose.msra.mxu0 0.0
    %515 = vmatpush.xpose.msra.mxu0 0.0
    %516 = vmatpush.xpose.msra.mxu0 0.0
    %517 = vmatpush.xpose.msra.mxu0 0.0
    %518 = vmatpush.xpose.msra.mxu0 0.0
    %519 = vmatpush.xpose.msra.mxu0 %v275
    %520 = vmatmul.f32.gmra.mxu0 %v275
    %v521 = vpop.f32.mrf.mxu0
    %v522 = vadd.f32 0.0, %v521
    %523 = vdwg.mxu0
    %524 = vmatpush.xpose.msra.mxu0 0.0
    %525 = vmatpush.xpose.msra.mxu0 0.0
    %526 = vmatpush.xpose.msra.mxu0 0.0
    %527 = vmatpush.xpose.msra.mxu0 0.0
    %528 = vmatpush.xpose.msra.mxu0 0.0
    %529 = vmatpush.xpose.msra.mxu0 0.0
    %530 = vmatpush.xpose.msra.mxu0 0.0
    %531 = vmatpush.xpose.msra.mxu0 0.0
    %532 = vmatpush.xpose.msra.mxu0 0.0
    %533 = vmatpush.xpose.msra.mxu0 0.0
    %534 = vmatpush.xpose.msra.mxu0 0.0
    %535 = vmatpush.xpose.msra.mxu0 0.0
    %536 = vmatpush.xpose.msra.mxu0 0.0
    %537 = vmatpush.xpose.msra.mxu0 0.0
    %538 = vmatpush.xpose.msra.mxu0 0.0
    %539 = vmatpush.xpose.msra.mxu0 %v277
    %540 = vmatmul.f32.gmra.mxu0 %v277
    %v541 = vpop.f32.mrf.mxu0
    %v542 = vadd.f32 0.0, %v541
    %543 = vdwg.mxu0
    %544 = vmatpush.xpose.msra.mxu0 0.0
    %545 = vmatpush.xpose.msra.mxu0 0.0
    %546 = vmatpush.xpose.msra.mxu0 0.0
    %547 = vmatpush.xpose.msra.mxu0 0.0
    %548 = vmatpush.xpose.msra.mxu0 0.0
    %549 = vmatpush.xpose.msra.mxu0 0.0
    %550 = vmatpush.xpose.msra.mxu0 0.0
    %551 = vmatpush.xpose.msra.mxu0 0.0
    %552 = vmatpush.xpose.msra.mxu0 0.0
    %553 = vmatpush.xpose.msra.mxu0 0.0
    %554 = vmatpush.xpose.msra.mxu0 0.0
    %555 = vmatpush.xpose.msra.mxu0 0.0
    %556 = vmatpush.xpose.msra.mxu0 0.0
    %557 = vmatpush.xpose.msra.mxu0 0.0
    %558 = vmatpush.xpose.msra.mxu0 0.0
    %559 = vmatpush.xpose.msra.mxu0 %v279
    %560 = vmatmul.f32.gmra.mxu0 %v279
    %v561 = vpop.f32.mrf.mxu0
    %v562 = vadd.f32 0.0, %v561
    %563 = vdwg.mxu0
    %564 = vmatpush.xpose.msra.mxu0 0.0
    %565 = vmatpush.xpose.msra.mxu0 0.0
    %566 = vmatpush.xpose.msra.mxu0 0.0
    %567 = vmatpush.xpose.msra.mxu0 0.0
    %568 = vmatpush.xpose.msra.mxu0 0.0
    %569 = vmatpush.xpose.msra.mxu0 0.0
    %570 = vmatpush.xpose.msra.mxu0 0.0
    %571 = vmatpush.xpose.msra.mxu0 0.0
    %572 = vmatpush.xpose.msra.mxu0 0.0
    %573 = vmatpush.xpose.msra.mxu0 0.0
    %574 = vmatpush.xpose.msra.mxu0 0.0
    %575 = vmatpush.xpose.msra.mxu0 0.0
    %576 = vmatpush.xpose.msra.mxu0 0.0
    %577 = vmatpush.xpose.msra.mxu0 0.0
    %578 = vmatpush.xpose.msra.mxu0 0.0
    %579 = vmatpush.xpose.msra.mxu0 %v281
    %580 = vmatmul.f32.gmra.mxu0 %v281
    %v581 = vpop.f32.mrf.mxu0
    %v582 = vadd.f32 0.0, %v581
    %583 = vdwg.mxu0
    %584 = vmatpush.xpose.msra.mxu0 0.0
    %585 = vmatpush.xpose.msra.mxu0 0.0
    %586 = vmatpush.xpose.msra.mxu0 0.0
    %587 = vmatpush.xpose.msra.mxu0 0.0
    %588 = vmatpush.xpose.msra.mxu0 0.0
    %589 = vmatpush.xpose.msra.mxu0 0.0
    %590 = vmatpush.xpose.msra.mxu0 0.0
    %591 = vmatpush.xpose.msra.mxu0 0.0
    %592 = vmatpush.xpose.msra.mxu0 0.0
    %593 = vmatpush.xpose.msra.mxu0 0.0
    %594 = vmatpush.xpose.msra.mxu0 0.0
    %595 = vmatpush.xpose.msra.mxu0 0.0
    %596 = vmatpush.xpose.msra.mxu0 0.0
    %597 = vmatpush.xpose.msra.mxu0 0.0
    %598 = vmatpush.xpose.msra.mxu0 0.0
    %599 = vmatpush.xpose.msra.mxu0 %v283
    %600 = vmatmul.f32.gmra.mxu0 %v283
    %v601 = vpop.f32.mrf.mxu0
    %v602 = vadd.f32 0.0, %v601
    %603 = vdwg.mxu0
    %vm604 = vcmask 64512
    %v605 = vsel %vm604, %v302, -inf
    %606 = vmax.xlane.f32.xlu0 %v605
    %v607 = vpop.xlane.xlu0 %606
    %v608 = vsel %vm604, %v322, -inf
    %609 = vmax.xlane.f32.xlu0 %v608
    %v610 = vpop.xlane.xlu0 %609
    %v611 = vsel %vm604, %v342, -inf
    %612 = vmax.xlane.f32.xlu0 %v611
    %v613 = vpop.xlane.xlu0 %612
    %v614 = vsel %vm604, %v362, -inf
    %615 = vmax.xlane.f32.xlu0 %v614
    %v616 = vpop.xlane.xlu0 %615
    %v617 = vsel %vm604, %v382, -inf
    %618 = vmax.xlane.f32.xlu0 %v617
    %v619 = vpop.xlane.xlu0 %618
    %v620 = vsel %vm604, %v402, -inf
    %621 = vmax.xlane.f32.xlu0 %v620
    %v622 = vpop.xlane.xlu0 %621
    %v623 = vsel %vm604, %v422, -inf
    %624 = vmax.xlane.f32.xlu0 %v623
    %v625 = vpop.xlane.xlu0 %624
    %v626 = vsel %vm604, %v442, -inf
    %627 = vmax.xlane.f32.xlu0 %v626
    %v628 = vpop.xlane.xlu0 %627
    %v629 = vsel %vm604, %v462, -inf
    %630 = vmax.xlane.f32.xlu0 %v629
    %v631 = vpop.xlane.xlu0 %630
    %v632 = vsel %vm604, %v482, -inf
    %633 = vmax.xlane.f32.xlu0 %v632
    %v634 = vpop.xlane.xlu0 %633
    %v635 = vsel %vm604, %v502, -inf
    %636 = vmax.xlane.f32.xlu0 %v635
    %v637 = vpop.xlane.xlu0 %636
    %v638 = vsel %vm604, %v522, -inf
    %639 = vmax.xlane.f32.xlu0 %v638
    %v640 = vpop.xlane.xlu0 %639
    %v641 = vsel %vm604, %v542, -inf
    %642 = vmax.xlane.f32.xlu0 %v641
    %v643 = vpop.xlane.xlu0 %642
    %v644 = vsel %vm604, %v562, -inf
    %645 = vmax.xlane.f32.xlu0 %v644
    %v646 = vpop.xlane.xlu0 %645
    %v647 = vsel %vm604, %v582, -inf
    %648 = vmax.xlane.f32.xlu0 %v647
    %v649 = vpop.xlane.xlu0 %648
    %v650 = vsel %vm604, %v602, -inf
    %651 = vmax.xlane.f32.xlu0 %v650
    %v652 = vpop.xlane.xlu0 %651
    %v653 = vsub.f32 %v302, %v607
    %v654 = vsub.f32 %v322, %v610
    %v655 = vsub.f32 %v342, %v613
    %v656 = vsub.f32 %v362, %v616
    %v657 = vsub.f32 %v382, %v619
    %v658 = vsub.f32 %v402, %v622
    %v659 = vsub.f32 %v422, %v625
    %v660 = vsub.f32 %v442, %v628
    %v661 = vsub.f32 %v462, %v631
    %v662 = vsub.f32 %v482, %v634
    %v663 = vsub.f32 %v502, %v637
    %v664 = vsub.f32 %v522, %v640
    %v665 = vsub.f32 %v542, %v643
    %v666 = vsub.f32 %v562, %v646
    %v667 = vsub.f32 %v582, %v649
    %v668 = vsub.f32 %v602, %v652
    %v669 = vmul.f32 %v653, 1.442695
    %v670 = vpow.pop %v669
    %v671 = vmul.f32 %v654, 1.442695
    %v672 = vpow.pop %v671
    %v673 = vmul.f32 %v655, 1.442695
    %v674 = vpow.pop %v673
    %v675 = vmul.f32 %v656, 1.442695
    %v676 = vpow.pop %v675
    %v677 = vmul.f32 %v657, 1.442695
    %v678 = vpow.pop %v677
    %v679 = vmul.f32 %v658, 1.442695
    %v680 = vpow.pop %v679
    %v681 = vmul.f32 %v659, 1.442695
    %v682 = vpow.pop %v681
    %v683 = vmul.f32 %v660, 1.442695
    %v684 = vpow.pop %v683
    %v685 = vmul.f32 %v661, 1.442695
    %v686 = vpow.pop %v685
    %v687 = vmul.f32 %v662, 1.442695
    %v688 = vpow.pop %v687
    %v689 = vmul.f32 %v663, 1.442695
    %v690 = vpow.pop %v689
    %v691 = vmul.f32 %v664, 1.442695
    %v692 = vpow.pop %v691
    %v693 = vmul.f32 %v665, 1.442695
    %v694 = vpow.pop %v693
    %v695 = vmul.f32 %v666, 1.442695
    %v696 = vpow.pop %v695
    %v697 = vmul.f32 %v667, 1.442695
    %v698 = vpow.pop %v697
    %v699 = vmul.f32 %v668, 1.442695
    %v700 = vpow.pop %v699
    %v701 = vsel %vm604, %v670, 0.0
    %702 = vadd.xlane.f32.xlu0 %v701
    %v703 = vpop.xlane.xlu0 %702
    %v704 = vsel %vm604, %v672, 0.0
    %705 = vadd.xlane.f32.xlu0 %v704
    %v706 = vpop.xlane.xlu0 %705
    %v707 = vsel %vm604, %v674, 0.0
    %708 = vadd.xlane.f32.xlu0 %v707
    %v709 = vpop.xlane.xlu0 %708
    %v710 = vsel %vm604, %v676, 0.0
    %711 = vadd.xlane.f32.xlu0 %v710
    %v712 = vpop.xlane.xlu0 %711
    %v713 = vsel %vm604, %v678, 0.0
    %714 = vadd.xlane.f32.xlu0 %v713
    %v715 = vpop.xlane.xlu0 %714
    %v716 = vsel %vm604, %v680, 0.0
    %717 = vadd.xlane.f32.xlu0 %v716
    %v718 = vpop.xlane.xlu0 %717
    %v719 = vsel %vm604, %v682, 0.0
    %720 = vadd.xlane.f32.xlu0 %v719
    %v721 = vpop.xlane.xlu0 %720
    %v722 = vsel %vm604, %v684, 0.0
    %723 = vadd.xlane.f32.xlu0 %v722
    %v724 = vpop.xlane.xlu0 %723
    %v725 = vsel %vm604, %v686, 0.0
    %726 = vadd.xlane.f32.xlu0 %v725
    %v727 = vpop.xlane.xlu0 %726
    %v728 = vsel %vm604, %v688, 0.0
    %729 = vadd.xlane.f32.xlu0 %v728
    %v730 = vpop.xlane.xlu0 %729
    %v731 = vsel %vm604, %v690, 0.0
    %732 = vadd.xlane.f32.xlu0 %v731
    %v733 = vpop.xlane.xlu0 %732
    %v734 = vsel %vm604, %v692, 0.0
    %735 = vadd.xlane.f32.xlu0 %v734
    %v736 = vpop.xlane.xlu0 %735
    %v737 = vsel %vm604, %v694, 0.0
    %738 = vadd.xlane.f32.xlu0 %v737
    %v739 = vpop.xlane.xlu0 %738
    %v740 = vsel %vm604, %v696, 0.0
    %741 = vadd.xlane.f32.xlu0 %v740
    %v742 = vpop.xlane.xlu0 %741
    %v743 = vsel %vm604, %v698, 0.0
    %744 = vadd.xlane.f32.xlu0 %v743
    %v745 = vpop.xlane.xlu0 %744
    %v746 = vsel %vm604, %v700, 0.0
    %747 = vadd.xlane.f32.xlu0 %v746
    %v748 = vpop.xlane.xlu0 %747
    %v749 = vmul.f32 %v157, %v157
    %v750 = vmul.f32 %v159, %v159
    %v751 = vmul.f32 %v161, %v161
    %v752 = vmul.f32 %v163, %v163
    %v753 = vmul.f32 %v165, %v165
    %v754 = vmul.f32 %v167, %v167
    %v755 = vmul.f32 %v169, %v169
    %v756 = vmul.f32 %v171, %v171
    %v757 = vmul.f32 %v269, %v269
    %v758 = vmul.f32 %v271, %v271
    %v759 = vmul.f32 %v273, %v273
    %v760 = vmul.f32 %v275, %v275
    %v761 = vmul.f32 %v277, %v277
    %v762 = vmul.f32 %v279, %v279
    %v763 = vmul.f32 %v281, %v281
    %v764 = vmul.f32 %v283, %v283
    %765 = vadd.xlane.f32.xlu0 %v749
    %v766 = vpop.xlane.xlu0 %765
    %767 = vadd.xlane.f32.xlu0 %v750
    %v768 = vpop.xlane.xlu0 %767
    %769 = vadd.xlane.f32.xlu0 %v751
    %v770 = vpop.xlane.xlu0 %769
    %771 = vadd.xlane.f32.xlu0 %v752
    %v772 = vpop.xlane.xlu0 %771
    %773 = vadd.xlane.f32.xlu0 %v753
    %v774 = vpop.xlane.xlu0 %773
    %775 = vadd.xlane.f32.xlu0 %v754
    %v776 = vpop.xlane.xlu0 %775
    %777 = vadd.xlane.f32.xlu0 %v755
    %v778 = vpop.xlane.xlu0 %777
    %779 = vadd.xlane.f32.xlu0 %v756
    %v780 = vpop.xlane.xlu0 %779
    %781 = vadd.xlane.f32.xlu0 %v757
    %v782 = vpop.xlane.xlu0 %781
    %783 = vadd.xlane.f32.xlu0 %v758
    %v784 = vpop.xlane.xlu0 %783
    %785 = vadd.xlane.f32.xlu0 %v759
    %v786 = vpop.xlane.xlu0 %785
    %787 = vadd.xlane.f32.xlu0 %v760
    %v788 = vpop.xlane.xlu0 %787
    %789 = vadd.xlane.f32.xlu0 %v761
    %v790 = vpop.xlane.xlu0 %789
    %791 = vadd.xlane.f32.xlu0 %v762
    %v792 = vpop.xlane.xlu0 %791
    %793 = vadd.xlane.f32.xlu0 %v763
    %v794 = vpop.xlane.xlu0 %793
    %795 = vadd.xlane.f32.xlu0 %v764
    %v796 = vpop.xlane.xlu0 %795
    %v797 = vmul.f32 %v703, 2.0
    %v798 = vmul.f32 %v706, 2.0
    %v799 = vmul.f32 %v709, 2.0
    %v800 = vmul.f32 %v712, 2.0
    %v801 = vmul.f32 %v715, 2.0
    %v802 = vmul.f32 %v718, 2.0
    %v803 = vmul.f32 %v721, 2.0
    %v804 = vmul.f32 %v724, 2.0
    %v805 = vmul.f32 %v727, 2.0
    %v806 = vmul.f32 %v730, 2.0
    %v807 = vmul.f32 %v733, 2.0
    %v808 = vmul.f32 %v736, 2.0
    %v809 = vmul.f32 %v739, 2.0
    %v810 = vmul.f32 %v742, 2.0
    %v811 = vmul.f32 %v745, 2.0
    %v812 = vmul.f32 %v748, 2.0
    %v813 = vsub.f32 %v766, %v607
    %v814 = vsub.f32 %v768, %v610
    %v815 = vsub.f32 %v770, %v613
    %v816 = vsub.f32 %v772, %v616
    %v817 = vsub.f32 %v774, %v619
    %v818 = vsub.f32 %v776, %v622
    %v819 = vsub.f32 %v778, %v625
    %v820 = vsub.f32 %v780, %v628
    %v821 = vsub.f32 %v782, %v631
    %v822 = vsub.f32 %v784, %v634
    %v823 = vsub.f32 %v786, %v637
    %v824 = vsub.f32 %v788, %v640
    %v825 = vsub.f32 %v790, %v643
    %v826 = vsub.f32 %v792, %v646
    %v827 = vsub.f32 %v794, %v649
    %v828 = vsub.f32 %v796, %v652
    %v829 = vmul.f32 %v813, 1.442695
    %v830 = vpow.pop %v829
    %v831 = vmul.f32 %v814, 1.442695
    %v832 = vpow.pop %v831
    %v833 = vmul.f32 %v815, 1.442695
    %v834 = vpow.pop %v833
    %v835 = vmul.f32 %v816, 1.442695
    %v836 = vpow.pop %v835
    %v837 = vmul.f32 %v817, 1.442695
    %v838 = vpow.pop %v837
    %v839 = vmul.f32 %v818, 1.442695
    %v840 = vpow.pop %v839
    %v841 = vmul.f32 %v819, 1.442695
    %v842 = vpow.pop %v841
    %v843 = vmul.f32 %v820, 1.442695
    %v844 = vpow.pop %v843
    %v845 = vmul.f32 %v821, 1.442695
    %v846 = vpow.pop %v845
    %v847 = vmul.f32 %v822, 1.442695
    %v848 = vpow.pop %v847
    %v849 = vmul.f32 %v823, 1.442695
    %v850 = vpow.pop %v849
    %v851 = vmul.f32 %v824, 1.442695
    %v852 = vpow.pop %v851
    %v853 = vmul.f32 %v825, 1.442695
    %v854 = vpow.pop %v853
    %v855 = vmul.f32 %v826, 1.442695
    %v856 = vpow.pop %v855
    %v857 = vmul.f32 %v827, 1.442695
    %v858 = vpow.pop %v857
    %v859 = vmul.f32 %v828, 1.442695
    %v860 = vpow.pop %v859
    %v861 = vsub.f32 %v797, %v830
    %v862 = vsub.f32 %v798, %v832
    %v863 = vsub.f32 %v799, %v834
    %v864 = vsub.f32 %v800, %v836
    %v865 = vsub.f32 %v801, %v838
    %v866 = vsub.f32 %v802, %v840
    %v867 = vsub.f32 %v803, %v842
    %v868 = vsub.f32 %v804, %v844
    %v869 = vsub.f32 %v805, %v846
    %v870 = vsub.f32 %v806, %v848
    %v871 = vsub.f32 %v807, %v850
    %v872 = vsub.f32 %v808, %v852
    %v873 = vsub.f32 %v809, %v854
    %v874 = vsub.f32 %v810, %v856
    %v875 = vsub.f32 %v811, %v858
    %v876 = vsub.f32 %v812, %v860
    %v877 = vlog2.pop %v861
    %v878 = vmul.f32 %v877, 0.6931472
    %v879 = vlog2.pop %v862
    %v880 = vmul.f32 %v879, 0.6931472
    %v881 = vlog2.pop %v863
    %v882 = vmul.f32 %v881, 0.6931472
    %v883 = vlog2.pop %v864
    %v884 = vmul.f32 %v883, 0.6931472
    %v885 = vlog2.pop %v865
    %v886 = vmul.f32 %v885, 0.6931472
    %v887 = vlog2.pop %v866
    %v888 = vmul.f32 %v887, 0.6931472
    %v889 = vlog2.pop %v867
    %v890 = vmul.f32 %v889, 0.6931472
    %v891 = vlog2.pop %v868
    %v892 = vmul.f32 %v891, 0.6931472
    %v893 = vlog2.pop %v869
    %v894 = vmul.f32 %v893, 0.6931472
    %v895 = vlog2.pop %v870
    %v896 = vmul.f32 %v895, 0.6931472
    %v897 = vlog2.pop %v871
    %v898 = vmul.f32 %v897, 0.6931472
    %v899 = vlog2.pop %v872
    %v900 = vmul.f32 %v899, 0.6931472
    %v901 = vlog2.pop %v873
    %v902 = vmul.f32 %v901, 0.6931472
    %v903 = vlog2.pop %v874
    %v904 = vmul.f32 %v903, 0.6931472
    %v905 = vlog2.pop %v875
    %v906 = vmul.f32 %v905, 0.6931472
    %v907 = vlog2.pop %v876
    %v908 = vmul.f32 %v907, 0.6931472
    %v909 = vadd.f32 %v607, %v878
    %v910 = vadd.f32 %v610, %v880
    %v911 = vadd.f32 %v613, %v882
    %v912 = vadd.f32 %v616, %v884
    %v913 = vadd.f32 %v619, %v886
    %v914 = vadd.f32 %v622, %v888
    %v915 = vadd.f32 %v625, %v890
    %v916 = vadd.f32 %v628, %v892
    %v917 = vadd.f32 %v631, %v894
    %v918 = vadd.f32 %v634, %v896
    %v919 = vadd.f32 %v637, %v898
    %v920 = vadd.f32 %v640, %v900
    %v921 = vadd.f32 %v643, %v902
    %v922 = vadd.f32 %v646, %v904
    %v923 = vadd.f32 %v649, %v906
    %v924 = vadd.f32 %v652, %v908
    %v925 = vmul.f32 %v43, %v51
    %v926 = vmul.f32 %v44, %v52
    %v927 = vmul.f32 %v45, %v53
    %v928 = vmul.f32 %v46, %v54
    %v929 = vmul.f32 %v47, %v55
    %v930 = vmul.f32 %v48, %v56
    %v931 = vmul.f32 %v49, %v57
    %v932 = vmul.f32 %v50, %v58
    %933 = vadd.xlane.f32.xlu0 %v925
    %v934 = vpop.xlane.xlu0 %933
    %935 = vadd.xlane.f32.xlu0 %v926
    %v936 = vpop.xlane.xlu0 %935
    %937 = vadd.xlane.f32.xlu0 %v927
    %v938 = vpop.xlane.xlu0 %937
    %939 = vadd.xlane.f32.xlu0 %v928
    %v940 = vpop.xlane.xlu0 %939
    %941 = vadd.xlane.f32.xlu0 %v929
    %v942 = vpop.xlane.xlu0 %941
    %943 = vadd.xlane.f32.xlu0 %v930
    %v944 = vpop.xlane.xlu0 %943
    %945 = vadd.xlane.f32.xlu0 %v931
    %v946 = vpop.xlane.xlu0 %945
    %947 = vadd.xlane.f32.xlu0 %v932
    %v948 = vpop.xlane.xlu0 %947
    %v957 = vlaneseq
    %v958 = vand.u32 %v957, 127
    %v959 = vperm.slane %v934, %v958
    %v960 = vadd.s32 %v958, 4294967288
    %v961 = vperm.slane %v936, %v960
    %vm962 = vcmask 130112
    %v963 = vsel %vm962, %v961, %v959
    %v964 = vperm.slane %v938, %v958
    %v965 = vperm.slane %v940, %v960
    %v966 = vsel %vm962, %v965, %v964
    %v967 = vperm.slane %v942, %v958
    %v968 = vperm.slane %v944, %v960
    %v969 = vsel %vm962, %v968, %v967
    %v970 = vperm.slane %v946, %v958
    %v971 = vperm.slane %v948, %v960
    %v972 = vsel %vm962, %v971, %v970
    %vm973 = vcmask 1041409
    %v974 = vsel %vm973, %v966, %v963
    %vm975 = vcmask 1042434
    %v976 = vsel %vm975, %v969, %v974
    %vm977 = vcmask 1043459
    %v978 = vsel %vm977, %v972, %v976
    %vm980 = vcmask 1045509
    %v981 = vsel %vm980, %v966, %v963
    %vm982 = vcmask 1046534
    %v983 = vsel %vm982, %v969, %v981
    %vm984 = vcmask 1047559
    %v985 = vsel %vm984, %v972, %v983
    %vm987 = vcmask 1043456
    %v988 = vsel %vm987, %v978, %v985
    %v1005 = vperm.slane %v909, %v958
    %v1006 = vperm.slane %v910, %v958
    %v1007 = vperm.slane %v911, %v958
    %v1008 = vperm.slane %v912, %v958
    %v1009 = vperm.slane %v913, %v958
    %v1010 = vperm.slane %v914, %v958
    %v1011 = vperm.slane %v915, %v958
    %v1012 = vperm.slane %v916, %v958
    %v1013 = vperm.slane %v917, %v958
    %v1014 = vperm.slane %v918, %v958
    %v1015 = vperm.slane %v919, %v958
    %v1016 = vperm.slane %v920, %v958
    %v1017 = vperm.slane %v921, %v958
    %v1018 = vperm.slane %v922, %v958
    %v1019 = vperm.slane %v923, %v958
    %v1020 = vperm.slane %v924, %v958
    %v1021 = vsel %vm973, %v1006, %v1005
    %v1022 = vsel %vm975, %v1007, %v1021
    %v1023 = vsel %vm977, %v1008, %v1022
    %vm1024 = vcmask 1044484
    %v1025 = vsel %vm1024, %v1009, %v1023
    %v1026 = vsel %vm980, %v1010, %v1025
    %v1027 = vsel %vm982, %v1011, %v1026
    %v1028 = vsel %vm984, %v1012, %v1027
    %v1029 = vsel %vm973, %v1014, %v1013
    %v1030 = vsel %vm975, %v1015, %v1029
    %v1031 = vsel %vm977, %v1016, %v1030
    %v1032 = vsel %vm1024, %v1017, %v1031
    %v1033 = vsel %vm980, %v1018, %v1032
    %v1034 = vsel %vm982, %v1019, %v1033
    %v1035 = vsel %vm984, %v1020, %v1034
    %1038 = vxpose.xlu0.b32.start [1/16] %v1028, 128
    %1039 = vxpose.xlu0.b32.cont [2/16] %v1035, 128
    %1040 = vxpose.xlu0.b32.cont [3/16] 0.0, 128
    %1041 = vxpose.xlu0.b32.cont [4/16] 0.0, 128
    %1042 = vxpose.xlu0.b32.cont [5/16] 0.0, 128
    %1043 = vxpose.xlu0.b32.cont [6/16] 0.0, 128
    %1044 = vxpose.xlu0.b32.cont [7/16] 0.0, 128
    %1045 = vxpose.xlu0.b32.cont [8/16] 0.0, 128
    %1046 = vxpose.xlu0.b32.cont [9/16] 0.0, 128
    %1047 = vxpose.xlu0.b32.cont [10/16] 0.0, 128
    %1048 = vxpose.xlu0.b32.cont [11/16] 0.0, 128
    %1049 = vxpose.xlu0.b32.cont [12/16] 0.0, 128
    %1050 = vxpose.xlu0.b32.cont [13/16] 0.0, 128
    %1051 = vxpose.xlu0.b32.cont [14/16] 0.0, 128
    %1052 = vxpose.xlu0.b32.cont [15/16] 0.0, 128
    %1053 = vxpose.xlu0.b32.end [16/16] 0.0, 128
    %v1054 = vpop.trf.xlu0
    %v1055 = vpop.trf.xlu0
    %v1056 = vpop.trf.xlu0
    %v1057 = vpop.trf.xlu0
    %v1058 = vpop.trf.xlu0
    %v1059 = vpop.trf.xlu0
    %v1060 = vpop.trf.xlu0
    %v1061 = vpop.trf.xlu0
    %v1062 = vpop.trf.xlu0
    %v1063 = vpop.trf.xlu0
    %v1064 = vpop.trf.xlu0
    %v1065 = vpop.trf.xlu0
    %v1066 = vpop.trf.xlu0
    %v1067 = vpop.trf.xlu0
    %v1068 = vpop.trf.xlu0
    %v1069 = vpop.trf.xlu0
    %v1070 = vsub.f32 %v1054, %v988
    %s1071 = smul.u32 0, 16
    %v1072 = vstv %s1071
    %v1073 = vadd.s32 %v1072, %v958
    %vm1074 = vcmp.lt.s32.totalorder %v1073, 16
    %v1075 = vsel %vm1074, %v1070, 0.0
    %vm1076 = vcmask 130048
    %1077 = vst.msk [vmem:[%s2] sm:$0xff] %vm1076, %v1075
    // Predicated region
    $region18: #{_forward_direct.1} parent=1 // pred_check
      _
    $region19: #{_forward_direct.1} parent=1 // pred_check_branch
      %1079 = sbr.rel (0) target = $region21
    $region20: #{_forward_direct.1} parent=1 // pred_region
      _
    $region21: #{_forward_direct.1} parent=1 // pred_fallthru
      _
    // Predicated region
    $region22: #{_forward_direct.1} parent=1 // pred_check
      _
    $region23: #{_forward_direct.1} parent=1 // pred_check_branch
      %1081 = sbr.rel (0) target = $region25
    $region24: #{_forward_direct.1} parent=1 // pred_region
      _
    $region25: #{_forward_direct.1} parent=1 // pred_fallthru
      _
    %1082 = vsyncpa [#allocation3], 1
    %1083 = vsyncpa [#allocation5], 1

// kernel: _forward_slab.1
$region0: #{_forward_slab.1}
  #allocation0 [shape = 'u32[]', space=smem, size = 0x4, offset = 0x4, fixed_abs, tag = 'smem constant byte address 0x4 - core index']
  #allocation1 [shape = 'u32[72,128]{1,0:T(1,128)}', space=vmem, size = 0x9000, scoped, tag = 'internal scratch']
  %s0 = inlined_call_operand.vmem [shape: f32[8,8,32], index: 0, kind: input, shape index: {}]
  %s1 = inlined_call_operand.vmem [shape: f32[8,8], index: 1, kind: output, shape index: {}]
  %s2 = sld [smem:[#allocation0]]
  $region14: #{_forward_slab.1} parent=0
    _
  %s4 = ssub.s32 1, %s2
  %s5 = scalar_select 0, %s4, %s2
  // Predicated region
  $region2: #{_forward_slab.1} parent=0 // pred_check
    _
  $region3: #{_forward_slab.1} parent=0 // pred_check_branch
    %7 = sbr.rel (0) target = $region5
  $region4: #{_forward_slab.1} parent=0 // pred_region
    _
  $region5: #{_forward_slab.1} parent=0 // pred_fallthru
    _
  %v8 = vld [vmem:[%s0] sm:$0xff]
  %v9 = vld [vmem:[%s0 + $0x8] sm:$0xff]
  %v10 = vld [vmem:[%s0 + $0x10] sm:$0xff]
  %v11 = vld [vmem:[%s0 + $0x18] sm:$0xff]
  %v12 = vld [vmem:[%s0 + $0x20] sm:$0xff]
  %v13 = vld [vmem:[%s0 + $0x28] sm:$0xff]
  %v14 = vld [vmem:[%s0 + $0x30] sm:$0xff]
  %v15 = vld [vmem:[%s0 + $0x38] sm:$0xff]
  %vm16 = vcmask 261120
  %v18 = vsel %vm16, %v8, 0
  %20 = vmatpush.xpose.msra.mxu0 0.0
  %21 = vmatpush.xpose.msra.mxu0 0.0
  %22 = vmatpush.xpose.msra.mxu0 0.0
  %23 = vmatpush.xpose.msra.mxu0 0.0
  %24 = vmatpush.xpose.msra.mxu0 0.0
  %25 = vmatpush.xpose.msra.mxu0 0.0
  %26 = vmatpush.xpose.msra.mxu0 0.0
  %27 = vmatpush.xpose.msra.mxu0 0.0
  %28 = vmatpush.xpose.msra.mxu0 0.0
  %29 = vmatpush.xpose.msra.mxu0 0.0
  %30 = vmatpush.xpose.msra.mxu0 0.0
  %31 = vmatpush.xpose.msra.mxu0 0.0
  %32 = vmatpush.xpose.msra.mxu0 0.0
  %33 = vmatpush.xpose.msra.mxu0 0.0
  %34 = vmatpush.xpose.msra.mxu0 0.0
  %35 = vmatpush.xpose.msra.mxu0 %v18
  %36 = vmatmul.f32.gmra.mxu0 %v18
  %v37 = vpop.f32.mrf.mxu0
  %v38 = vadd.f32 0.0, %v37
  %39 = vdwg.mxu0
  %v41 = vsel %vm16, %v9, 0
  %43 = vmatpush.xpose.msra.mxu0 0.0
  %44 = vmatpush.xpose.msra.mxu0 0.0
  %45 = vmatpush.xpose.msra.mxu0 0.0
  %46 = vmatpush.xpose.msra.mxu0 0.0
  %47 = vmatpush.xpose.msra.mxu0 0.0
  %48 = vmatpush.xpose.msra.mxu0 0.0
  %49 = vmatpush.xpose.msra.mxu0 0.0
  %50 = vmatpush.xpose.msra.mxu0 0.0
  %51 = vmatpush.xpose.msra.mxu0 0.0
  %52 = vmatpush.xpose.msra.mxu0 0.0
  %53 = vmatpush.xpose.msra.mxu0 0.0
  %54 = vmatpush.xpose.msra.mxu0 0.0
  %55 = vmatpush.xpose.msra.mxu0 0.0
  %56 = vmatpush.xpose.msra.mxu0 0.0
  %57 = vmatpush.xpose.msra.mxu0 0.0
  %58 = vmatpush.xpose.msra.mxu0 %v41
  %59 = vmatmul.f32.gmra.mxu0 %v41
  %v60 = vpop.f32.mrf.mxu0
  %v61 = vadd.f32 0.0, %v60
  %62 = vdwg.mxu0
  %v64 = vsel %vm16, %v10, 0
  %66 = vmatpush.xpose.msra.mxu0 0.0
  %67 = vmatpush.xpose.msra.mxu0 0.0
  %68 = vmatpush.xpose.msra.mxu0 0.0
  %69 = vmatpush.xpose.msra.mxu0 0.0
  %70 = vmatpush.xpose.msra.mxu0 0.0
  %71 = vmatpush.xpose.msra.mxu0 0.0
  %72 = vmatpush.xpose.msra.mxu0 0.0
  %73 = vmatpush.xpose.msra.mxu0 0.0
  %74 = vmatpush.xpose.msra.mxu0 0.0
  %75 = vmatpush.xpose.msra.mxu0 0.0
  %76 = vmatpush.xpose.msra.mxu0 0.0
  %77 = vmatpush.xpose.msra.mxu0 0.0
  %78 = vmatpush.xpose.msra.mxu0 0.0
  %79 = vmatpush.xpose.msra.mxu0 0.0
  %80 = vmatpush.xpose.msra.mxu0 0.0
  %81 = vmatpush.xpose.msra.mxu0 %v64
  %82 = vmatmul.f32.gmra.mxu0 %v64
  %v83 = vpop.f32.mrf.mxu0
  %v84 = vadd.f32 0.0, %v83
  %85 = vdwg.mxu0
  %v87 = vsel %vm16, %v11, 0
  %89 = vmatpush.xpose.msra.mxu0 0.0
  %90 = vmatpush.xpose.msra.mxu0 0.0
  %91 = vmatpush.xpose.msra.mxu0 0.0
  %92 = vmatpush.xpose.msra.mxu0 0.0
  %93 = vmatpush.xpose.msra.mxu0 0.0
  %94 = vmatpush.xpose.msra.mxu0 0.0
  %95 = vmatpush.xpose.msra.mxu0 0.0
  %96 = vmatpush.xpose.msra.mxu0 0.0
  %97 = vmatpush.xpose.msra.mxu0 0.0
  %98 = vmatpush.xpose.msra.mxu0 0.0
  %99 = vmatpush.xpose.msra.mxu0 0.0
  %100 = vmatpush.xpose.msra.mxu0 0.0
  %101 = vmatpush.xpose.msra.mxu0 0.0
  %102 = vmatpush.xpose.msra.mxu0 0.0
  %103 = vmatpush.xpose.msra.mxu0 0.0
  %104 = vmatpush.xpose.msra.mxu0 %v87
  %105 = vmatmul.f32.gmra.mxu0 %v87
  %v106 = vpop.f32.mrf.mxu0
  %v107 = vadd.f32 0.0, %v106
  %108 = vdwg.mxu0
  %v110 = vsel %vm16, %v12, 0
  %112 = vmatpush.xpose.msra.mxu0 0.0
  %113 = vmatpush.xpose.msra.mxu0 0.0
  %114 = vmatpush.xpose.msra.mxu0 0.0
  %115 = vmatpush.xpose.msra.mxu0 0.0
  %116 = vmatpush.xpose.msra.mxu0 0.0
  %117 = vmatpush.xpose.msra.mxu0 0.0
  %118 = vmatpush.xpose.msra.mxu0 0.0
  %119 = vmatpush.xpose.msra.mxu0 0.0
  %120 = vmatpush.xpose.msra.mxu0 0.0
  %121 = vmatpush.xpose.msra.mxu0 0.0
  %122 = vmatpush.xpose.msra.mxu0 0.0
  %123 = vmatpush.xpose.msra.mxu0 0.0
  %124 = vmatpush.xpose.msra.mxu0 0.0
  %125 = vmatpush.xpose.msra.mxu0 0.0
  %126 = vmatpush.xpose.msra.mxu0 0.0
  %127 = vmatpush.xpose.msra.mxu0 %v110
  %128 = vmatmul.f32.gmra.mxu0 %v110
  %v129 = vpop.f32.mrf.mxu0
  %v130 = vadd.f32 0.0, %v129
  %131 = vdwg.mxu0
  %v133 = vsel %vm16, %v13, 0
  %135 = vmatpush.xpose.msra.mxu0 0.0
  %136 = vmatpush.xpose.msra.mxu0 0.0
  %137 = vmatpush.xpose.msra.mxu0 0.0
  %138 = vmatpush.xpose.msra.mxu0 0.0
  %139 = vmatpush.xpose.msra.mxu0 0.0
  %140 = vmatpush.xpose.msra.mxu0 0.0
  %141 = vmatpush.xpose.msra.mxu0 0.0
  %142 = vmatpush.xpose.msra.mxu0 0.0
  %143 = vmatpush.xpose.msra.mxu0 0.0
  %144 = vmatpush.xpose.msra.mxu0 0.0
  %145 = vmatpush.xpose.msra.mxu0 0.0
  %146 = vmatpush.xpose.msra.mxu0 0.0
  %147 = vmatpush.xpose.msra.mxu0 0.0
  %148 = vmatpush.xpose.msra.mxu0 0.0
  %149 = vmatpush.xpose.msra.mxu0 0.0
  %150 = vmatpush.xpose.msra.mxu0 %v133
  %151 = vmatmul.f32.gmra.mxu0 %v133
  %v152 = vpop.f32.mrf.mxu0
  %v153 = vadd.f32 0.0, %v152
  %154 = vdwg.mxu0
  %v156 = vsel %vm16, %v14, 0
  %158 = vmatpush.xpose.msra.mxu0 0.0
  %159 = vmatpush.xpose.msra.mxu0 0.0
  %160 = vmatpush.xpose.msra.mxu0 0.0
  %161 = vmatpush.xpose.msra.mxu0 0.0
  %162 = vmatpush.xpose.msra.mxu0 0.0
  %163 = vmatpush.xpose.msra.mxu0 0.0
  %164 = vmatpush.xpose.msra.mxu0 0.0
  %165 = vmatpush.xpose.msra.mxu0 0.0
  %166 = vmatpush.xpose.msra.mxu0 0.0
  %167 = vmatpush.xpose.msra.mxu0 0.0
  %168 = vmatpush.xpose.msra.mxu0 0.0
  %169 = vmatpush.xpose.msra.mxu0 0.0
  %170 = vmatpush.xpose.msra.mxu0 0.0
  %171 = vmatpush.xpose.msra.mxu0 0.0
  %172 = vmatpush.xpose.msra.mxu0 0.0
  %173 = vmatpush.xpose.msra.mxu0 %v156
  %174 = vmatmul.f32.gmra.mxu0 %v156
  %v175 = vpop.f32.mrf.mxu0
  %v176 = vadd.f32 0.0, %v175
  %177 = vdwg.mxu0
  %v179 = vsel %vm16, %v15, 0
  %181 = vmatpush.xpose.msra.mxu0 0.0
  %182 = vmatpush.xpose.msra.mxu0 0.0
  %183 = vmatpush.xpose.msra.mxu0 0.0
  %184 = vmatpush.xpose.msra.mxu0 0.0
  %185 = vmatpush.xpose.msra.mxu0 0.0
  %186 = vmatpush.xpose.msra.mxu0 0.0
  %187 = vmatpush.xpose.msra.mxu0 0.0
  %188 = vmatpush.xpose.msra.mxu0 0.0
  %189 = vmatpush.xpose.msra.mxu0 0.0
  %190 = vmatpush.xpose.msra.mxu0 0.0
  %191 = vmatpush.xpose.msra.mxu0 0.0
  %192 = vmatpush.xpose.msra.mxu0 0.0
  %193 = vmatpush.xpose.msra.mxu0 0.0
  %194 = vmatpush.xpose.msra.mxu0 0.0
  %195 = vmatpush.xpose.msra.mxu0 0.0
  %196 = vmatpush.xpose.msra.mxu0 %v179
  %197 = vmatmul.f32.gmra.mxu0 %v179
  %v198 = vpop.f32.mrf.mxu0
  %v199 = vadd.f32 0.0, %v198
  %200 = vdwg.mxu0
  %vm201 = vcmask 64512
  %v202 = vsel %vm201, %v38, -inf
  %203 = vmax.xlane.f32.xlu0 %v202
  %v204 = vpop.xlane.xlu0 %203
  %v205 = vsel %vm201, %v61, -inf
  %206 = vmax.xlane.f32.xlu0 %v205
  %v207 = vpop.xlane.xlu0 %206
  %v208 = vsel %vm201, %v84, -inf
  %209 = vmax.xlane.f32.xlu0 %v208
  %v210 = vpop.xlane.xlu0 %209
  %v211 = vsel %vm201, %v107, -inf
  %212 = vmax.xlane.f32.xlu0 %v211
  %v213 = vpop.xlane.xlu0 %212
  %v214 = vsel %vm201, %v130, -inf
  %215 = vmax.xlane.f32.xlu0 %v214
  %v216 = vpop.xlane.xlu0 %215
  %v217 = vsel %vm201, %v153, -inf
  %218 = vmax.xlane.f32.xlu0 %v217
  %v219 = vpop.xlane.xlu0 %218
  %v220 = vsel %vm201, %v176, -inf
  %221 = vmax.xlane.f32.xlu0 %v220
  %v222 = vpop.xlane.xlu0 %221
  %v223 = vsel %vm201, %v199, -inf
  %224 = vmax.xlane.f32.xlu0 %v223
  %v225 = vpop.xlane.xlu0 %224
  %v226 = vsub.f32 %v38, %v204
  %v227 = vsub.f32 %v61, %v207
  %v228 = vsub.f32 %v84, %v210
  %v229 = vsub.f32 %v107, %v213
  %v230 = vsub.f32 %v130, %v216
  %v231 = vsub.f32 %v153, %v219
  %v232 = vsub.f32 %v176, %v222
  %v233 = vsub.f32 %v199, %v225
  %v234 = vmul.f32 %v226, 1.442695
  %v235 = vpow.pop %v234
  %v236 = vmul.f32 %v227, 1.442695
  %v237 = vpow.pop %v236
  %v238 = vmul.f32 %v228, 1.442695
  %v239 = vpow.pop %v238
  %v240 = vmul.f32 %v229, 1.442695
  %v241 = vpow.pop %v240
  %v242 = vmul.f32 %v230, 1.442695
  %v243 = vpow.pop %v242
  %v244 = vmul.f32 %v231, 1.442695
  %v245 = vpow.pop %v244
  %v246 = vmul.f32 %v232, 1.442695
  %v247 = vpow.pop %v246
  %v248 = vmul.f32 %v233, 1.442695
  %v249 = vpow.pop %v248
  %v250 = vsel %vm201, %v235, 0.0
  %251 = vadd.xlane.f32.xlu0 %v250
  %v252 = vpop.xlane.xlu0 %251
  %v253 = vsel %vm201, %v237, 0.0
  %254 = vadd.xlane.f32.xlu0 %v253
  %v255 = vpop.xlane.xlu0 %254
  %v256 = vsel %vm201, %v239, 0.0
  %257 = vadd.xlane.f32.xlu0 %v256
  %v258 = vpop.xlane.xlu0 %257
  %v259 = vsel %vm201, %v241, 0.0
  %260 = vadd.xlane.f32.xlu0 %v259
  %v261 = vpop.xlane.xlu0 %260
  %v262 = vsel %vm201, %v243, 0.0
  %263 = vadd.xlane.f32.xlu0 %v262
  %v264 = vpop.xlane.xlu0 %263
  %v265 = vsel %vm201, %v245, 0.0
  %266 = vadd.xlane.f32.xlu0 %v265
  %v267 = vpop.xlane.xlu0 %266
  %v268 = vsel %vm201, %v247, 0.0
  %269 = vadd.xlane.f32.xlu0 %v268
  %v270 = vpop.xlane.xlu0 %269
  %v271 = vsel %vm201, %v249, 0.0
  %272 = vadd.xlane.f32.xlu0 %v271
  %v273 = vpop.xlane.xlu0 %272
  %v274 = vmul.f32 %v8, %v8
  %v275 = vmul.f32 %v9, %v9
  %v276 = vmul.f32 %v10, %v10
  %v277 = vmul.f32 %v11, %v11
  %v278 = vmul.f32 %v12, %v12
  %v279 = vmul.f32 %v13, %v13
  %v280 = vmul.f32 %v14, %v14
  %v281 = vmul.f32 %v15, %v15
  %v282 = vsel %vm16, %v274, 0.0
  %283 = vadd.xlane.f32.xlu0 %v282
  %v284 = vpop.xlane.xlu0 %283
  %v285 = vsel %vm16, %v275, 0.0
  %286 = vadd.xlane.f32.xlu0 %v285
  %v287 = vpop.xlane.xlu0 %286
  %v288 = vsel %vm16, %v276, 0.0
  %289 = vadd.xlane.f32.xlu0 %v288
  %v290 = vpop.xlane.xlu0 %289
  %v291 = vsel %vm16, %v277, 0.0
  %292 = vadd.xlane.f32.xlu0 %v291
  %v293 = vpop.xlane.xlu0 %292
  %v294 = vsel %vm16, %v278, 0.0
  %295 = vadd.xlane.f32.xlu0 %v294
  %v296 = vpop.xlane.xlu0 %295
  %v297 = vsel %vm16, %v279, 0.0
  %298 = vadd.xlane.f32.xlu0 %v297
  %v299 = vpop.xlane.xlu0 %298
  %v300 = vsel %vm16, %v280, 0.0
  %301 = vadd.xlane.f32.xlu0 %v300
  %v302 = vpop.xlane.xlu0 %301
  %v303 = vsel %vm16, %v281, 0.0
  %304 = vadd.xlane.f32.xlu0 %v303
  %v305 = vpop.xlane.xlu0 %304
  %v306 = vmul.f32 %v252, 2.0
  %v307 = vmul.f32 %v255, 2.0
  %v308 = vmul.f32 %v258, 2.0
  %v309 = vmul.f32 %v261, 2.0
  %v310 = vmul.f32 %v264, 2.0
  %v311 = vmul.f32 %v267, 2.0
  %v312 = vmul.f32 %v270, 2.0
  %v313 = vmul.f32 %v273, 2.0
  %v314 = vsub.f32 %v284, %v204
  %v315 = vsub.f32 %v287, %v207
  %v316 = vsub.f32 %v290, %v210
  %v317 = vsub.f32 %v293, %v213
  %v318 = vsub.f32 %v296, %v216
  %v319 = vsub.f32 %v299, %v219
  %v320 = vsub.f32 %v302, %v222
  %v321 = vsub.f32 %v305, %v225
  %v322 = vmul.f32 %v314, 1.442695
  %v323 = vpow.pop %v322
  %v324 = vmul.f32 %v315, 1.442695
  %v325 = vpow.pop %v324
  %v326 = vmul.f32 %v316, 1.442695
  %v327 = vpow.pop %v326
  %v328 = vmul.f32 %v317, 1.442695
  %v329 = vpow.pop %v328
  %v330 = vmul.f32 %v318, 1.442695
  %v331 = vpow.pop %v330
  %v332 = vmul.f32 %v319, 1.442695
  %v333 = vpow.pop %v332
  %v334 = vmul.f32 %v320, 1.442695
  %v335 = vpow.pop %v334
  %v336 = vmul.f32 %v321, 1.442695
  %v337 = vpow.pop %v336
  %v338 = vsub.f32 %v306, %v323
  %v339 = vsub.f32 %v307, %v325
  %v340 = vsub.f32 %v308, %v327
  %v341 = vsub.f32 %v309, %v329
  %v342 = vsub.f32 %v310, %v331
  %v343 = vsub.f32 %v311, %v333
  %v344 = vsub.f32 %v312, %v335
  %v345 = vsub.f32 %v313, %v337
  %v346 = vlog2.pop %v338
  %v347 = vmul.f32 %v346, 0.6931472
  %v348 = vlog2.pop %v339
  %v349 = vmul.f32 %v348, 0.6931472
  %v350 = vlog2.pop %v340
  %v351 = vmul.f32 %v350, 0.6931472
  %v352 = vlog2.pop %v341
  %v353 = vmul.f32 %v352, 0.6931472
  %v354 = vlog2.pop %v342
  %v355 = vmul.f32 %v354, 0.6931472
  %v356 = vlog2.pop %v343
  %v357 = vmul.f32 %v356, 0.6931472
  %v358 = vlog2.pop %v344
  %v359 = vmul.f32 %v358, 0.6931472
  %v360 = vlog2.pop %v345
  %v361 = vmul.f32 %v360, 0.6931472
  %v362 = vadd.f32 %v204, %v347
  %v363 = vadd.f32 %v207, %v349
  %v364 = vadd.f32 %v210, %v351
  %v365 = vadd.f32 %v213, %v353
  %v366 = vadd.f32 %v216, %v355
  %v367 = vadd.f32 %v219, %v357
  %v368 = vadd.f32 %v222, %v359
  %v369 = vadd.f32 %v225, %v361
  %v370 = vrot.slane %v8, 4
  %v371 = vrot.slane %v9, 4
  %v372 = vrot.slane %v10, 4
  %v373 = vrot.slane %v11, 4
  %v374 = vrot.slane %v12, 4
  %v375 = vrot.slane %v13, 4
  %v376 = vrot.slane %v14, 4
  %v377 = vrot.slane %v15, 4
  %v386 = vmul.f32 %v8, %v370
  %v387 = vmul.f32 %v9, %v371
  %v388 = vmul.f32 %v10, %v372
  %v389 = vmul.f32 %v11, %v373
  %v390 = vmul.f32 %v12, %v374
  %v391 = vmul.f32 %v13, %v375
  %v392 = vmul.f32 %v14, %v376
  %v393 = vmul.f32 %v15, %v377
  %vm394 = vcmask 257024
  %v395 = vsel %vm394, %v386, 0.0
  %396 = vadd.xlane.f32.xlu0 %v395
  %v397 = vpop.xlane.xlu0 %396
  %v398 = vsel %vm394, %v387, 0.0
  %399 = vadd.xlane.f32.xlu0 %v398
  %v400 = vpop.xlane.xlu0 %399
  %v401 = vsel %vm394, %v388, 0.0
  %402 = vadd.xlane.f32.xlu0 %v401
  %v403 = vpop.xlane.xlu0 %402
  %v404 = vsel %vm394, %v389, 0.0
  %405 = vadd.xlane.f32.xlu0 %v404
  %v406 = vpop.xlane.xlu0 %405
  %v407 = vsel %vm394, %v390, 0.0
  %408 = vadd.xlane.f32.xlu0 %v407
  %v409 = vpop.xlane.xlu0 %408
  %v410 = vsel %vm394, %v391, 0.0
  %411 = vadd.xlane.f32.xlu0 %v410
  %v412 = vpop.xlane.xlu0 %411
  %v413 = vsel %vm394, %v392, 0.0
  %414 = vadd.xlane.f32.xlu0 %v413
  %v415 = vpop.xlane.xlu0 %414
  %v416 = vsel %vm394, %v393, 0.0
  %417 = vadd.xlane.f32.xlu0 %v416
  %v418 = vpop.xlane.xlu0 %417
  %v427 = vlaneseq
  %v428 = vand.u32 %v427, 127
  %v429 = vperm.slane %v397, %v428
  %v430 = vperm.slane %v400, %v428
  %v431 = vperm.slane %v403, %v428
  %v432 = vperm.slane %v406, %v428
  %v433 = vperm.slane %v409, %v428
  %v434 = vperm.slane %v412, %v428
  %v435 = vperm.slane %v415, %v428
  %v436 = vperm.slane %v418, %v428
  %vm437 = vcmask 1041409
  %v438 = vsel %vm437, %v430, %v429
  %vm439 = vcmask 1042434
  %v440 = vsel %vm439, %v431, %v438
  %vm441 = vcmask 1043459
  %v442 = vsel %vm441, %v432, %v440
  %vm443 = vcmask 1044484
  %v444 = vsel %vm443, %v433, %v442
  %vm445 = vcmask 1045509
  %v446 = vsel %vm445, %v434, %v444
  %vm447 = vcmask 1046534
  %v448 = vsel %vm447, %v435, %v446
  %vm449 = vcmask 1047559
  %v450 = vsel %vm449, %v436, %v448
  %452 = vxpose.xlu0.b32.start [1/16] %v450, 128
  %453 = vxpose.xlu0.b32.cont [2/16] 0.0, 128
  %454 = vxpose.xlu0.b32.cont [3/16] 0.0, 128
  %455 = vxpose.xlu0.b32.cont [4/16] 0.0, 128
  %456 = vxpose.xlu0.b32.cont [5/16] 0.0, 128
  %457 = vxpose.xlu0.b32.cont [6/16] 0.0, 128
  %458 = vxpose.xlu0.b32.cont [7/16] 0.0, 128
  %459 = vxpose.xlu0.b32.cont [8/16] 0.0, 128
  %460 = vxpose.xlu0.b32.cont [9/16] 0.0, 128
  %461 = vxpose.xlu0.b32.cont [10/16] 0.0, 128
  %462 = vxpose.xlu0.b32.cont [11/16] 0.0, 128
  %463 = vxpose.xlu0.b32.cont [12/16] 0.0, 128
  %464 = vxpose.xlu0.b32.cont [13/16] 0.0, 128
  %465 = vxpose.xlu0.b32.cont [14/16] 0.0, 128
  %466 = vxpose.xlu0.b32.cont [15/16] 0.0, 128
  %467 = vxpose.xlu0.b32.end [16/16] 0.0, 128
  %v468 = vpop.trf.xlu0
  %v469 = vpop.trf.xlu0
  %v470 = vpop.trf.xlu0
  %v471 = vpop.trf.xlu0
  %v472 = vpop.trf.xlu0
  %v473 = vpop.trf.xlu0
  %v474 = vpop.trf.xlu0
  %v475 = vpop.trf.xlu0
  %v476 = vpop.trf.xlu0
  %v477 = vpop.trf.xlu0
  %v478 = vpop.trf.xlu0
  %v479 = vpop.trf.xlu0
  %v480 = vpop.trf.xlu0
  %v481 = vpop.trf.xlu0
  %v482 = vpop.trf.xlu0
  %v483 = vpop.trf.xlu0
  %v485 = vrot.slane %v468, 4
  %vm487 = vcmask 1043456
  %v488 = vsel %vm487, %v468, %v485
  %v497 = vperm.slane %v362, %v428
  %v498 = vperm.slane %v363, %v428
  %v499 = vperm.slane %v364, %v428
  %v500 = vperm.slane %v365, %v428
  %v501 = vperm.slane %v366, %v428
  %v502 = vperm.slane %v367, %v428
  %v503 = vperm.slane %v368, %v428
  %v504 = vperm.slane %v369, %v428
  %v505 = vsel %vm437, %v498, %v497
  %v506 = vsel %vm439, %v499, %v505
  %v507 = vsel %vm441, %v500, %v506
  %v508 = vsel %vm443, %v501, %v507
  %v509 = vsel %vm445, %v502, %v508
  %v510 = vsel %vm447, %v503, %v509
  %v511 = vsel %vm449, %v504, %v510
  %513 = vxpose.xlu0.b32.start [1/16] %v511, 128
  %514 = vxpose.xlu0.b32.cont [2/16] 0.0, 128
  %515 = vxpose.xlu0.b32.cont [3/16] 0.0, 128
  %516 = vxpose.xlu0.b32.cont [4/16] 0.0, 128
  %517 = vxpose.xlu0.b32.cont [5/16] 0.0, 128
  %518 = vxpose.xlu0.b32.cont [6/16] 0.0, 128
  %519 = vxpose.xlu0.b32.cont [7/16] 0.0, 128
  %520 = vxpose.xlu0.b32.cont [8/16] 0.0, 128
  %521 = vxpose.xlu0.b32.cont [9/16] 0.0, 128
  %522 = vxpose.xlu0.b32.cont [10/16] 0.0, 128
  %523 = vxpose.xlu0.b32.cont [11/16] 0.0, 128
  %524 = vxpose.xlu0.b32.cont [12/16] 0.0, 128
  %525 = vxpose.xlu0.b32.cont [13/16] 0.0, 128
  %526 = vxpose.xlu0.b32.cont [14/16] 0.0, 128
  %527 = vxpose.xlu0.b32.cont [15/16] 0.0, 128
  %528 = vxpose.xlu0.b32.end [16/16] 0.0, 128
  %v529 = vpop.trf.xlu0
  %v530 = vpop.trf.xlu0
  %v531 = vpop.trf.xlu0
  %v532 = vpop.trf.xlu0
  %v533 = vpop.trf.xlu0
  %v534 = vpop.trf.xlu0
  %v535 = vpop.trf.xlu0
  %v536 = vpop.trf.xlu0
  %v537 = vpop.trf.xlu0
  %v538 = vpop.trf.xlu0
  %v539 = vpop.trf.xlu0
  %v540 = vpop.trf.xlu0
  %v541 = vpop.trf.xlu0
  %v542 = vpop.trf.xlu0
  %v543 = vpop.trf.xlu0
  %v544 = vpop.trf.xlu0
  %v545 = vsub.f32 %v529, %v488
  %s546 = smul.u32 0, 8
  %v547 = vstv %s546
  %v548 = vadd.s32 %v547, %v428
  %vm549 = vcmp.lt.s32.totalorder %v548, 8
  %v550 = vsel %vm549, %v545, 0.0
  %551 = vst.msk [vmem:[%s1] sm:$0xff] %vm201, %v550
  // Predicated region
  $region6: #{_forward_slab.1} parent=0 // pred_check
    _
  $region7: #{_forward_slab.1} parent=0 // pred_check_branch
    %553 = sbr.rel (0) target = $region9
  $region8: #{_forward_slab.1} parent=0 // pred_region
    _
  $region9: #{_forward_slab.1} parent=0 // pred_fallthru
    _
  // Predicated region
  $region10: #{_forward_slab.1} parent=0 // pred_check
    _
  $region11: #{_forward_slab.1} parent=0 // pred_check_branch
    %555 = sbr.rel (0) target = $region13
  $region12: #{_forward_slab.1} parent=0 // pred_region
    _
  $region13: #{_forward_slab.1} parent=0 // pred_fallthru
    _

</llo_original>
